<compile_context>
chip_gen: v7x
topology: tpu7x:2x2x1
jax: 0.10.0
libtpu: 0.0.40
codegen_flags: <defaults>
</compile_context>

<pallas_src>
import numpy as np
import jax
import jax.numpy as jnp
from jax.experimental import pallas as pl
from jax.experimental.pallas import tpu as pltpu


# ----------------------------- Pallas kernel ------------------------------- #

def _make_kernel(N, V, S, CeT, OT):
    """Builds the fused kernel for static dims (samples & subsets unrolled)."""
    grp = 2 * CeT + OT          # per-subset column group in the fused weight

    def kernel(xT_ref, w_ref, b_ref, bd_ref, paT_ref, alpha_ref, y_ref):
        alpha = alpha_ref[0]                                    # SMEM scalar

        # One wide bf16 matmul for all 1x1 convs, all subsets, all samples:
        #   (N*V, C*T) @ (C*T, S*(2*Ce*T + O*T)), f32 accumulation.
        F = jnp.dot(xT_ref[...], w_ref[...],
                    preferred_element_type=jnp.float32) + b_ref[...]

        for n in range(N):                     # static unroll over samples
            r0 = n * V
            acc = bd_ref[...]                  # (1, O*T): sum_i bd[i], broadcast
            for i in range(S):                 # static unroll over subsets
                c0 = i * grp
                faT = F[r0:r0 + V, c0:c0 + CeT]                # (V, Ce*T)
                fbT = F[r0:r0 + V, c0 + CeT:c0 + 2 * CeT]      # (V, Ce*T), pre-scaled by 1/(Ce*T)
                gT = F[r0:r0 + V, c0 + 2 * CeT:c0 + grp]       # (V, O*T) = (Wd @ x)^T

                # logits^T[w, u] = sum_k fb_scaled[w, k] * fa[u, k]
                logitsT = jax.lax.dot_general(
                    fbT, faT, (((1,), (1,)), ((), ())),
                    preferred_element_type=jnp.float32)        # (V, V)

                # softmax(logits, dim=-2) == softmax(logits^T, axis=-1)
                m = jnp.max(logitsT, axis=-1, keepdims=True)
                e = jnp.exp(logitsT - m)
                attnT = e * pl.reciprocal(
                    jnp.sum(e, axis=-1, keepdims=True), approx=True)
                a1T = paT_ref[i] + attnT * alpha               # (V, V) = A1^T

                # conv_d hoisted: Wd @ (X @ A1) == (Wd @ X) @ A1
                acc = acc + jnp.dot(a1T, gT,
                                    preferred_element_type=jnp.float32)

            y_ref[pl.ds(r0, V), :] = acc       # lane-dense (V, O*T) store

    return kernel


# --------------------------- parameter packing ------------------------------ #

def prepare_params(PA, alpha, Wa, ba, Wb, bb, Wd, bd, T):
    """One-time packing of module parameters (hoisted out of the forward)."""
    S, Ce, C = Wa.shape
    O = Wd.shape[1]
    CT, CeT, OT = C * T, Ce * T, O * T
    inv_k = 1.0 / CeT
    eye_T = jnp.eye(T, dtype=jnp.float32)

    def kron_T(W):   # (S, out, C) -> (S, C*T, out*T); [(c,t),(e,t')] = W[e,c]*d_tt'
        out = W.shape[1]
        return jnp.einsum('sec,tu->scteu', W.astype(jnp.float32),
                          eye_T).reshape(S, CT, out * T)

    def bias_T(b, out):   # (S, out) -> (S, 1, out*T)
        return jnp.broadcast_to(b.astype(jnp.float32)[:, :, None],
                                (S, out, T)).reshape(S, 1, out * T)

    # Fused conv weight/bias: per subset [conv_a | conv_b/(Ce*T) | conv_d].
    W_cat = jnp.concatenate([kron_T(Wa), kron_T(Wb) * inv_k, kron_T(Wd)], axis=2)
    W_all = jnp.transpose(W_cat, (1, 0, 2)).reshape(CT, S * (2 * CeT + OT))
    b_cat = jnp.concatenate([bias_T(ba, Ce), bias_T(bb, Ce) * inv_k,
                             jnp.zeros((S, 1, OT), jnp.float32)], axis=2)
    b_all = jnp.transpose(b_cat, (1, 0, 2)).reshape(1, S * (2 * CeT + OT))

    # conv_d bias is added AFTER the A1 matmul; sum over subsets, added once.
    bd_total = jnp.sum(jnp.broadcast_to(bd.astype(jnp.float32)[:, :, None],
                                        (S, O, T)), axis=0).reshape(1, OT)

    PAT = jnp.transpose(PA.astype(jnp.float32), (0, 2, 1))        # (S, V, V)
    alpha_arr = jnp.asarray(alpha, jnp.float32).reshape((1,))

    return dict(W_all=W_all.astype(jnp.bfloat16), b_all=b_all,
                bd_total=bd_total, PAT=PAT, alpha=alpha_arr,
                dims=(S, Ce, O, T))


# ------------------------------- wrapper ----------------------------------- #

def adaptive_gcn_v2_apply(x_nctv, params):
    """x: (N, C, T, V) float32 -> (y: (N, O, T, V), A3_list=[])."""
    N, C, T, V = x_nctv.shape
    S, Ce, O, Tp = params["dims"]
    assert T == Tp
    CT, CeT, OT = C * T, Ce * T, O * T
    total = S * (2 * CeT + OT)

    # Transposed layout, batch folded into M: xT[n*V+v, c*T+t] = x[n,c,t,v]
    xT = jnp.transpose(x_nctv, (0, 3, 1, 2)).reshape(N * V, CT).astype(jnp.bfloat16)
    # TODO(synk): at real sizes fold this relayout into the kernel via a grid
    # over C/T with an index_map instead of a host-side transpose.

    yT = pl.pallas_call(
        _make_kernel(N, V, S, CeT, OT),
        out_shape=jax.ShapeDtypeStruct((N * V, OT), jnp.float32),
        grid=(1,),
        in_specs=[
            pl.BlockSpec((N * V, CT), lambda g: (0, 0)),          # xT (bf16)
            pl.BlockSpec((CT, total), lambda g: (0, 0)),          # fused conv weights (bf16)
            pl.BlockSpec((1, total), lambda g: (0, 0)),           # fused conv biases
            pl.BlockSpec((1, OT), lambda g: (0, 0)),              # sum_i bd[i]
            pl.BlockSpec((S, V, V), lambda g: (0, 0, 0)),         # PA^T
            pl.BlockSpec(memory_space=pltpu.MemorySpace.SMEM),    # alpha
        ],
        out_specs=pl.BlockSpec((N * V, OT), lambda g: (0, 0)),
        compiler_params=pltpu.CompilerParams(
            dimension_semantics=("arbitrary",)),
    )(xT, params["W_all"], params["b_all"], params["bd_total"],
      params["PAT"], params["alpha"])

    # (N*V, O*T) -> (N, O, T, V)
    y = jnp.transpose(yT.reshape(N, V, O, T), (0, 2, 3, 1))
    # return_attn=False path: A3_list empty (A3 is just x.view(N, C*T, V)).
    return y, []


def adaptive_gcn_v2(x, PA, alpha, Wa, ba, Wb, bb, Wd, bd):
    T = x.shape[2]
    return adaptive_gcn_v2_apply(
        x, prepare_params(PA, alpha, Wa, ba, Wb, bb, Wd, bd, T))


# --------------------------- pure-JAX reference ----------------------------- #

def reference(x, PA, alpha, Wa, ba, Wb, bb, Wd, bd):
    N, C, T, V = x.shape
    S = PA.shape[0]
    hp = jax.lax.Precision.HIGHEST
    y = None
    for i in range(S):
        fa = jnp.einsum('oc,nctv->notv', Wa[i], x, precision=hp) + ba[i][None, :, None, None]
        fb = jnp.einsum('oc,nctv->notv', Wb[i], x, precision=hp) + bb[i][None, :, None, None]
        A1 = jnp.transpose(fa, (0, 3, 1, 2)).reshape(N, V, -1)          # (N, V, Ce*T)
        A2 = fb.reshape(N, -1, V)                                       # (N, Ce*T, V)
        logits = jnp.matmul(A1, A2, precision=hp) / A1.shape[-1]
        attn = jax.nn.softmax(logits, axis=-2)
        A1f = PA[i][None] + attn * alpha[0]
        A3 = x.reshape(N, -1, V)
        z = jnp.matmul(A3, A1f, precision=hp).reshape(N, C, T, V)
        z = jnp.einsum('oc,nctv->notv', Wd[i], z, precision=hp) + bd[i][None, :, None, None]
        y = z if y is None else y + z
    return y


# ----------------------------------- main ----------------------------------- #

if __name__ == "__main__":
    # Small shapes consistent with the module: N, C=in_channels, T frames, V nodes.
    N, C, T, V = 2, 8, 16, 16
    S = 3                    # num_subset
    Ce = 8                   # out_channels of conv_a / conv_b
    O = 8                    # out_channels of conv_d

    key = jax.random.PRNGKey(0)
    ks = jax.random.split(key, 8)

    x = jax.random.normal(ks[0], (N, C, T, V), jnp.float32)

    PA = jax.random.uniform(ks[1], (S, V, V), jnp.float32) * 0.1          # adjacency-like
    # nn.Parameter(torch.zeros(1)) in __init__; use a nonzero value so the
    # adaptive-attention branch is actually exercised.
    alpha = jnp.array([0.5], jnp.float32)
    Wa = jax.random.normal(ks[2], (S, Ce, C), jnp.float32) * 0.2
    ba = jax.random.normal(ks[3], (S, Ce), jnp.float32) * 0.1
    Wb = jax.random.normal(ks[4], (S, Ce, C), jnp.float32) * 0.2
    bb = jax.random.normal(ks[5], (S, Ce), jnp.float32) * 0.1
    Wd = jax.random.normal(ks[6], (S, O, C), jnp.float32) * 0.2
    bd = jax.random.normal(ks[7], (S, O), jnp.float32) * 0.1

    params = prepare_params(PA, alpha, Wa, ba, Wb, bb, Wd, bd, T)  # one-time prep
    y_kernel, a3_list = adaptive_gcn_v2_apply(x, params)
    y_kernel = jax.block_until_ready(y_kernel)

    y_ref = jax.block_until_ready(reference(x, PA, alpha, Wa, ba, Wb, bb, Wd, bd))

    np.testing.assert_allclose(np.asarray(y_kernel), np.asarray(y_ref),
                               rtol=1e-2, atol=1e-2)
    assert y_kernel.shape == (N, O, T, V)
    assert a3_list == []

    print("KERNEL_OK")
</pallas_src>

<mosaic_0001>
module attributes {stable_mosaic.version = 11 : i64} {
  func.func @kernel(%arg0: i32, %arg1: memref<32x128xbf16, #tpu.memory_space<vmem>>, %arg2: memref<128x1152xbf16, #tpu.memory_space<vmem>>, %arg3: memref<1x1152xf32, #tpu.memory_space<vmem>>, %arg4: memref<1x128xf32, #tpu.memory_space<vmem>>, %arg5: memref<3x16x16xf32, #tpu.memory_space<vmem>>, %arg6: memref<1xf32, #tpu.memory_space<smem>>, %arg7: memref<32x128xf32, #tpu.memory_space<vmem>>) attributes {dimension_semantics = [#tpu.dimension_semantics<arbitrary>], iteration_bounds = array<i64: 1>, scalar_prefetch = 0 : i64, scratch_operands = 0 : i64, tpu.core_type = #tpu.core_type<tc>, window_params = [{pipeline_mode = #tpu.pipeline_mode<synchronous>, transform_indices = @transform_0, window_bounds = array<i64: 32, 128>}, {pipeline_mode = #tpu.pipeline_mode<synchronous>, transform_indices = @transform_1, window_bounds = array<i64: 128, 1152>}, {pipeline_mode = #tpu.pipeline_mode<synchronous>, transform_indices = @transform_2, window_bounds = array<i64: 1, 1152>}, {pipeline_mode = #tpu.pipeline_mode<synchronous>, transform_indices = @transform_3, window_bounds = array<i64: 1, 128>}, {pipeline_mode = #tpu.pipeline_mode<synchronous>, transform_indices = @transform_4, window_bounds = array<i64: 3, 16, 16>}, {transform_indices = @transform_5, window_bounds = array<i64: 1>}, {pipeline_mode = #tpu.pipeline_mode<synchronous>, transform_indices = @transform_6, window_bounds = array<i64: 32, 128>}]} {
    %c0 = arith.constant 0 : index
    %0 = memref.load %arg6[%c0] : memref<1xf32, #tpu.memory_space<smem>>
    %c0_0 = arith.constant 0 : index
    %c0_1 = arith.constant 0 : index
    %1 = vector.load %arg1[%c0_0, %c0_1] : memref<32x128xbf16, #tpu.memory_space<vmem>>, vector<32x128xbf16>
    %c0_2 = arith.constant 0 : index
    %c0_3 = arith.constant 0 : index
    %2 = vector.load %arg2[%c0_2, %c0_3] : memref<128x1152xbf16, #tpu.memory_space<vmem>>, vector<128x1152xbf16>
    %cst = arith.constant dense<0.000000e+00> : vector<32x1152xf32>
    %3 = tpu.matmul %1, %2, %cst {dimension_numbers = #tpu.dot_dimension_numbers<[1], [0], [0], [1], [0, 0, 1, 1], [], []>} : vector<32x128xbf16>, vector<128x1152xbf16>, vector<32x1152xf32> -> vector<32x1152xf32>
    %c0_4 = arith.constant 0 : index
    %c0_5 = arith.constant 0 : index
    %4 = vector.load %arg3[%c0_4, %c0_5] : memref<1x1152xf32, #tpu.memory_space<vmem>>, vector<1x1152xf32>
    %5 = vector.broadcast %4 : vector<1x1152xf32> to vector<32x1152xf32>
    %6 = arith.addf %3, %5 : vector<32x1152xf32>
    %c0_6 = arith.constant 0 : index
    %c0_7 = arith.constant 0 : index
    %7 = vector.load %arg4[%c0_6, %c0_7] : memref<1x128xf32, #tpu.memory_space<vmem>>, vector<1x128xf32>
    %8 = vector.extract_strided_slice %6 {offsets = [0, 0], sizes = [16, 128], strides = [1, 1]} : vector<32x1152xf32> to vector<16x128xf32>
    %9 = vector.extract_strided_slice %6 {offsets = [0, 128], sizes = [16, 128], strides = [1, 1]} : vector<32x1152xf32> to vector<16x128xf32>
    %10 = vector.extract_strided_slice %6 {offsets = [0, 256], sizes = [16, 128], strides = [1, 1]} : vector<32x1152xf32> to vector<16x128xf32>
    %cst_8 = arith.constant dense<0.000000e+00> : vector<16x16xf32>
    %11 = tpu.matmul %9, %8, %cst_8 {dimension_numbers = #tpu.dot_dimension_numbers<[1], [1], [0], [0], [0, 0, 1, 0], [], []>} : vector<16x128xf32>, vector<16x128xf32>, vector<16x16xf32> -> vector<16x16xf32>
    %cst_9 = arith.constant dense<0xFF800000> : vector<16xf32>
    %12 = vector.multi_reduction <maximumf>, %11, %cst_9 [1] : vector<16x16xf32> to vector<16xf32>
    %13 = vector.shape_cast %12 : vector<16xf32> to vector<16x1xf32>
    %14 = vector.broadcast %13 : vector<16x1xf32> to vector<16x16xf32>
    %15 = arith.subf %11, %14 : vector<16x16xf32>
    %16 = math.exp %15 : vector<16x16xf32>
    %cst_10 = arith.constant dense<0.000000e+00> : vector<16xf32>
    %17 = vector.multi_reduction <add>, %16, %cst_10 [1] : vector<16x16xf32> to vector<16xf32>
    %18 = vector.shape_cast %17 : vector<16xf32> to vector<16x1xf32>
    %19 = tpu.reciprocal %18 {approx = true} : vector<16x1xf32> -> vector<16x1xf32>
    %20 = vector.broadcast %19 : vector<16x1xf32> to vector<16x16xf32>
    %21 = arith.mulf %16, %20 : vector<16x16xf32>
    %c0_11 = arith.constant 0 : index
    %c0_12 = arith.constant 0 : index
    %c0_13 = arith.constant 0 : index
    %22 = vector.load %arg5[%c0_11, %c0_12, %c0_13] : memref<3x16x16xf32, #tpu.memory_space<vmem>>, vector<1x16x16xf32>
    %23 = vector.shape_cast %22 : vector<1x16x16xf32> to vector<16x16xf32>
    %24 = vector.broadcast %0 : f32 to vector<16x16xf32>
    %25 = arith.mulf %21, %24 : vector<16x16xf32>
    %26 = arith.addf %23, %25 : vector<16x16xf32>
    %cst_14 = arith.constant dense<0.000000e+00> : vector<16x128xf32>
    %27 = tpu.matmul %26, %10, %cst_14 {dimension_numbers = #tpu.dot_dimension_numbers<[1], [0], [0], [1], [0, 0, 1, 1], [], []>} : vector<16x16xf32>, vector<16x128xf32>, vector<16x128xf32> -> vector<16x128xf32>
    %28 = vector.broadcast %7 : vector<1x128xf32> to vector<16x128xf32>
    %29 = arith.addf %28, %27 : vector<16x128xf32>
    %30 = vector.extract_strided_slice %6 {offsets = [0, 384], sizes = [16, 128], strides = [1, 1]} : vector<32x1152xf32> to vector<16x128xf32>
    %31 = vector.extract_strided_slice %6 {offsets = [0, 512], sizes = [16, 128], strides = [1, 1]} : vector<32x1152xf32> to vector<16x128xf32>
    %32 = vector.extract_strided_slice %6 {offsets = [0, 640], sizes = [16, 128], strides = [1, 1]} : vector<32x1152xf32> to vector<16x128xf32>
    %cst_15 = arith.constant dense<0.000000e+00> : vector<16x16xf32>
    %33 = tpu.matmul %31, %30, %cst_15 {dimension_numbers = #tpu.dot_dimension_numbers<[1], [1], [0], [0], [0, 0, 1, 0], [], []>} : vector<16x128xf32>, vector<16x128xf32>, vector<16x16xf32> -> vector<16x16xf32>
    %cst_16 = arith.constant dense<0xFF800000> : vector<16xf32>
    %34 = vector.multi_reduction <maximumf>, %33, %cst_16 [1] : vector<16x16xf32> to vector<16xf32>
    %35 = vector.shape_cast %34 : vector<16xf32> to vector<16x1xf32>
    %36 = vector.broadcast %35 : vector<16x1xf32> to vector<16x16xf32>
    %37 = arith.subf %33, %36 : vector<16x16xf32>
    %38 = math.exp %37 : vector<16x16xf32>
    %cst_17 = arith.constant dense<0.000000e+00> : vector<16xf32>
    %39 = vector.multi_reduction <add>, %38, %cst_17 [1] : vector<16x16xf32> to vector<16xf32>
    %40 = vector.shape_cast %39 : vector<16xf32> to vector<16x1xf32>
    %41 = tpu.reciprocal %40 {approx = true} : vector<16x1xf32> -> vector<16x1xf32>
    %42 = vector.broadcast %41 : vector<16x1xf32> to vector<16x16xf32>
    %43 = arith.mulf %38, %42 : vector<16x16xf32>
    %c1 = arith.constant 1 : index
    %c0_18 = arith.constant 0 : index
    %c0_19 = arith.constant 0 : index
    %44 = vector.load %arg5[%c1, %c0_18, %c0_19] : memref<3x16x16xf32, #tpu.memory_space<vmem>>, vector<1x16x16xf32>
    %45 = vector.shape_cast %44 : vector<1x16x16xf32> to vector<16x16xf32>
    %46 = vector.broadcast %0 : f32 to vector<16x16xf32>
    %47 = arith.mulf %43, %46 : vector<16x16xf32>
    %48 = arith.addf %45, %47 : vector<16x16xf32>
    %cst_20 = arith.constant dense<0.000000e+00> : vector<16x128xf32>
    %49 = tpu.matmul %48, %32, %cst_20 {dimension_numbers = #tpu.dot_dimension_numbers<[1], [0], [0], [1], [0, 0, 1, 1], [], []>} : vector<16x16xf32>, vector<16x128xf32>, vector<16x128xf32> -> vector<16x128xf32>
    %50 = arith.addf %29, %49 : vector<16x128xf32>
    %51 = vector.extract_strided_slice %6 {offsets = [0, 768], sizes = [16, 128], strides = [1, 1]} : vector<32x1152xf32> to vector<16x128xf32>
    %52 = vector.extract_strided_slice %6 {offsets = [0, 896], sizes = [16, 128], strides = [1, 1]} : vector<32x1152xf32> to vector<16x128xf32>
    %53 = vector.extract_strided_slice %6 {offsets = [0, 1024], sizes = [16, 128], strides = [1, 1]} : vector<32x1152xf32> to vector<16x128xf32>
    %cst_21 = arith.constant dense<0.000000e+00> : vector<16x16xf32>
    %54 = tpu.matmul %52, %51, %cst_21 {dimension_numbers = #tpu.dot_dimension_numbers<[1], [1], [0], [0], [0, 0, 1, 0], [], []>} : vector<16x128xf32>, vector<16x128xf32>, vector<16x16xf32> -> vector<16x16xf32>
    %cst_22 = arith.constant dense<0xFF800000> : vector<16xf32>
    %55 = vector.multi_reduction <maximumf>, %54, %cst_22 [1] : vector<16x16xf32> to vector<16xf32>
    %56 = vector.shape_cast %55 : vector<16xf32> to vector<16x1xf32>
    %57 = vector.broadcast %56 : vector<16x1xf32> to vector<16x16xf32>
    %58 = arith.subf %54, %57 : vector<16x16xf32>
    %59 = math.exp %58 : vector<16x16xf32>
    %cst_23 = arith.constant dense<0.000000e+00> : vector<16xf32>
    %60 = vector.multi_reduction <add>, %59, %cst_23 [1] : vector<16x16xf32> to vector<16xf32>
    %61 = vector.shape_cast %60 : vector<16xf32> to vector<16x1xf32>
    %62 = tpu.reciprocal %61 {approx = true} : vector<16x1xf32> -> vector<16x1xf32>
    %63 = vector.broadcast %62 : vector<16x1xf32> to vector<16x16xf32>
    %64 = arith.mulf %59, %63 : vector<16x16xf32>
    %c2 = arith.constant 2 : index
    %c0_24 = arith.constant 0 : index
    %c0_25 = arith.constant 0 : index
    %65 = vector.load %arg5[%c2, %c0_24, %c0_25] : memref<3x16x16xf32, #tpu.memory_space<vmem>>, vector<1x16x16xf32>
    %66 = vector.shape_cast %65 : vector<1x16x16xf32> to vector<16x16xf32>
    %67 = vector.broadcast %0 : f32 to vector<16x16xf32>
    %68 = arith.mulf %64, %67 : vector<16x16xf32>
    %69 = arith.addf %66, %68 : vector<16x16xf32>
    %cst_26 = arith.constant dense<0.000000e+00> : vector<16x128xf32>
    %70 = tpu.matmul %69, %53, %cst_26 {dimension_numbers = #tpu.dot_dimension_numbers<[1], [0], [0], [1], [0, 0, 1, 1], [], []>} : vector<16x16xf32>, vector<16x128xf32>, vector<16x128xf32> -> vector<16x128xf32>
    %71 = arith.addf %50, %70 : vector<16x128xf32>
    %c0_27 = arith.constant 0 : index
    %c0_28 = arith.constant 0 : index
    %72 = vector.load %arg7[%c0_27, %c0_28] : memref<32x128xf32, #tpu.memory_space<vmem>>, vector<16x128xf32>
    tpu.vector_store %arg7[%c0_27, %c0_28], %71 {strides = array<i32>} : memref<32x128xf32, #tpu.memory_space<vmem>>, vector<16x128xf32>,
    %c0_29 = arith.constant 0 : index
    %c0_30 = arith.constant 0 : index
    %73 = vector.load %arg4[%c0_29, %c0_30] : memref<1x128xf32, #tpu.memory_space<vmem>>, vector<1x128xf32>
    %74 = vector.extract_strided_slice %6 {offsets = [16, 0], sizes = [16, 128], strides = [1, 1]} : vector<32x1152xf32> to vector<16x128xf32>
    %75 = vector.extract_strided_slice %6 {offsets = [16, 128], sizes = [16, 128], strides = [1, 1]} : vector<32x1152xf32> to vector<16x128xf32>
    %76 = vector.extract_strided_slice %6 {offsets = [16, 256], sizes = [16, 128], strides = [1, 1]} : vector<32x1152xf32> to vector<16x128xf32>
    %cst_31 = arith.constant dense<0.000000e+00> : vector<16x16xf32>
    %77 = tpu.matmul %75, %74, %cst_31 {dimension_numbers = #tpu.dot_dimension_numbers<[1], [1], [0], [0], [0, 0, 1, 0], [], []>} : vector<16x128xf32>, vector<16x128xf32>, vector<16x16xf32> -> vector<16x16xf32>
    %cst_32 = arith.constant dense<0xFF800000> : vector<16xf32>
    %78 = vector.multi_reduction <maximumf>, %77, %cst_32 [1] : vector<16x16xf32> to vector<16xf32>
    %79 = vector.shape_cast %78 : vector<16xf32> to vector<16x1xf32>
    %80 = vector.broadcast %79 : vector<16x1xf32> to vector<16x16xf32>
    %81 = arith.subf %77, %80 : vector<16x16xf32>
    %82 = math.exp %81 : vector<16x16xf32>
    %cst_33 = arith.constant dense<0.000000e+00> : vector<16xf32>
    %83 = vector.multi_reduction <add>, %82, %cst_33 [1] : vector<16x16xf32> to vector<16xf32>
    %84 = vector.shape_cast %83 : vector<16xf32> to vector<16x1xf32>
    %85 = tpu.reciprocal %84 {approx = true} : vector<16x1xf32> -> vector<16x1xf32>
    %86 = vector.broadcast %85 : vector<16x1xf32> to vector<16x16xf32>
    %87 = arith.mulf %82, %86 : vector<16x16xf32>
    %c0_34 = arith.constant 0 : index
    %c0_35 = arith.constant 0 : index
    %c0_36 = arith.constant 0 : index
    %88 = vector.load %arg5[%c0_34, %c0_35, %c0_36] : memref<3x16x16xf32, #tpu.memory_space<vmem>>, vector<1x16x16xf32>
    %89 = vector.shape_cast %88 : vector<1x16x16xf32> to vector<16x16xf32>
    %90 = vector.broadcast %0 : f32 to vector<16x16xf32>
    %91 = arith.mulf %87, %90 : vector<16x16xf32>
    %92 = arith.addf %89, %91 : vector<16x16xf32>
    %cst_37 = arith.constant dense<0.000000e+00> : vector<16x128xf32>
    %93 = tpu.matmul %92, %76, %cst_37 {dimension_numbers = #tpu.dot_dimension_numbers<[1], [0], [0], [1], [0, 0, 1, 1], [], []>} : vector<16x16xf32>, vector<16x128xf32>, vector<16x128xf32> -> vector<16x128xf32>
    %94 = vector.broadcast %73 : vector<1x128xf32> to vector<16x128xf32>
    %95 = arith.addf %94, %93 : vector<16x128xf32>
    %96 = vector.extract_strided_slice %6 {offsets = [16, 384], sizes = [16, 128], strides = [1, 1]} : vector<32x1152xf32> to vector<16x128xf32>
    %97 = vector.extract_strided_slice %6 {offsets = [16, 512], sizes = [16, 128], strides = [1, 1]} : vector<32x1152xf32> to vector<16x128xf32>
    %98 = vector.extract_strided_slice %6 {offsets = [16, 640], sizes = [16, 128], strides = [1, 1]} : vector<32x1152xf32> to vector<16x128xf32>
    %cst_38 = arith.constant dense<0.000000e+00> : vector<16x16xf32>
    %99 = tpu.matmul %97, %96, %cst_38 {dimension_numbers = #tpu.dot_dimension_numbers<[1], [1], [0], [0], [0, 0, 1, 0], [], []>} : vector<16x128xf32>, vector<16x128xf32>, vector<16x16xf32> -> vector<16x16xf32>
    %cst_39 = arith.constant dense<0xFF800000> : vector<16xf32>
    %100 = vector.multi_reduction <maximumf>, %99, %cst_39 [1] : vector<16x16xf32> to vector<16xf32>
    %101 = vector.shape_cast %100 : vector<16xf32> to vector<16x1xf32>
    %102 = vector.broadcast %101 : vector<16x1xf32> to vector<16x16xf32>
    %103 = arith.subf %99, %102 : vector<16x16xf32>
    %104 = math.exp %103 : vector<16x16xf32>
    %cst_40 = arith.constant dense<0.000000e+00> : vector<16xf32>
    %105 = vector.multi_reduction <add>, %104, %cst_40 [1] : vector<16x16xf32> to vector<16xf32>
    %106 = vector.shape_cast %105 : vector<16xf32> to vector<16x1xf32>
    %107 = tpu.reciprocal %106 {approx = true} : vector<16x1xf32> -> vector<16x1xf32>
    %108 = vector.broadcast %107 : vector<16x1xf32> to vector<16x16xf32>
    %109 = arith.mulf %104, %108 : vector<16x16xf32>
    %c1_41 = arith.constant 1 : index
    %c0_42 = arith.constant 0 : index
    %c0_43 = arith.constant 0 : index
    %110 = vector.load %arg5[%c1_41, %c0_42, %c0_43] : memref<3x16x16xf32, #tpu.memory_space<vmem>>, vector<1x16x16xf32>
    %111 = vector.shape_cast %110 : vector<1x16x16xf32> to vector<16x16xf32>
    %112 = vector.broadcast %0 : f32 to vector<16x16xf32>
    %113 = arith.mulf %109, %112 : vector<16x16xf32>
    %114 = arith.addf %111, %113 : vector<16x16xf32>
    %cst_44 = arith.constant dense<0.000000e+00> : vector<16x128xf32>
    %115 = tpu.matmul %114, %98, %cst_44 {dimension_numbers = #tpu.dot_dimension_numbers<[1], [0], [0], [1], [0, 0, 1, 1], [], []>} : vector<16x16xf32>, vector<16x128xf32>, vector<16x128xf32> -> vector<16x128xf32>
    %116 = arith.addf %95, %115 : vector<16x128xf32>
    %117 = vector.extract_strided_slice %6 {offsets = [16, 768], sizes = [16, 128], strides = [1, 1]} : vector<32x1152xf32> to vector<16x128xf32>
    %118 = vector.extract_strided_slice %6 {offsets = [16, 896], sizes = [16, 128], strides = [1, 1]} : vector<32x1152xf32> to vector<16x128xf32>
    %119 = vector.extract_strided_slice %6 {offsets = [16, 1024], sizes = [16, 128], strides = [1, 1]} : vector<32x1152xf32> to vector<16x128xf32>
    %cst_45 = arith.constant dense<0.000000e+00> : vector<16x16xf32>
    %120 = tpu.matmul %118, %117, %cst_45 {dimension_numbers = #tpu.dot_dimension_numbers<[1], [1], [0], [0], [0, 0, 1, 0], [], []>} : vector<16x128xf32>, vector<16x128xf32>, vector<16x16xf32> -> vector<16x16xf32>
    %cst_46 = arith.constant dense<0xFF800000> : vector<16xf32>
    %121 = vector.multi_reduction <maximumf>, %120, %cst_46 [1] : vector<16x16xf32> to vector<16xf32>
    %122 = vector.shape_cast %121 : vector<16xf32> to vector<16x1xf32>
    %123 = vector.broadcast %122 : vector<16x1xf32> to vector<16x16xf32>
    %124 = arith.subf %120, %123 : vector<16x16xf32>
    %125 = math.exp %124 : vector<16x16xf32>
    %cst_47 = arith.constant dense<0.000000e+00> : vector<16xf32>
    %126 = vector.multi_reduction <add>, %125, %cst_47 [1] : vector<16x16xf32> to vector<16xf32>
    %127 = vector.shape_cast %126 : vector<16xf32> to vector<16x1xf32>
    %128 = tpu.reciprocal %127 {approx = true} : vector<16x1xf32> -> vector<16x1xf32>
    %129 = vector.broadcast %128 : vector<16x1xf32> to vector<16x16xf32>
    %130 = arith.mulf %125, %129 : vector<16x16xf32>
    %c2_48 = arith.constant 2 : index
    %c0_49 = arith.constant 0 : index
    %c0_50 = arith.constant 0 : index
    %131 = vector.load %arg5[%c2_48, %c0_49, %c0_50] : memref<3x16x16xf32, #tpu.memory_space<vmem>>, vector<1x16x16xf32>
    %132 = vector.shape_cast %131 : vector<1x16x16xf32> to vector<16x16xf32>
    %133 = vector.broadcast %0 : f32 to vector<16x16xf32>
    %134 = arith.mulf %130, %133 : vector<16x16xf32>
    %135 = arith.addf %132, %134 : vector<16x16xf32>
    %cst_51 = arith.constant dense<0.000000e+00> : vector<16x128xf32>
    %136 = tpu.matmul %135, %119, %cst_51 {dimension_numbers = #tpu.dot_dimension_numbers<[1], [0], [0], [1], [0, 0, 1, 1], [], []>} : vector<16x16xf32>, vector<16x128xf32>, vector<16x128xf32> -> vector<16x128xf32>
    %137 = arith.addf %116, %136 : vector<16x128xf32>
    %c16 = arith.constant 16 : index
    %c0_52 = arith.constant 0 : index
    %138 = vector.load %arg7[%c16, %c0_52] : memref<32x128xf32, #tpu.memory_space<vmem>>, vector<16x128xf32>
    tpu.vector_store %arg7[%c16, %c0_52], %137 {strides = array<i32>} : memref<32x128xf32, #tpu.memory_space<vmem>>, vector<16x128xf32>,
    return
  }
  func.func @transform_0(%arg0: i32) -> (i32, i32) {
    %c0_i32 = arith.constant 0 : i32
    %c0_i32_0 = arith.constant 0 : i32
    %c0_i32_1 = arith.constant 0 : i32
    return %c0_i32, %c0_i32_0 : i32, i32
  }
  func.func @transform_1(%arg0: i32) -> (i32, i32) {
    %c0_i32 = arith.constant 0 : i32
    %c0_i32_0 = arith.constant 0 : i32
    %c0_i32_1 = arith.constant 0 : i32
    return %c0_i32, %c0_i32_0 : i32, i32
  }
  func.func @transform_2(%arg0: i32) -> (i32, i32) {
    %c0_i32 = arith.constant 0 : i32
    %c0_i32_0 = arith.constant 0 : i32
    %c0_i32_1 = arith.constant 0 : i32
    return %c0_i32, %c0_i32_0 : i32, i32
  }
  func.func @transform_3(%arg0: i32) -> (i32, i32) {
    %c0_i32 = arith.constant 0 : i32
    %c0_i32_0 = arith.constant 0 : i32
    %c0_i32_1 = arith.constant 0 : i32
    return %c0_i32, %c0_i32_0 : i32, i32
  }
  func.func @transform_4(%arg0: i32) -> (i32, i32, i32) {
    %c0_i32 = arith.constant 0 : i32
    %c0_i32_0 = arith.constant 0 : i32
    %c0_i32_1 = arith.constant 0 : i32
    %c0_i32_2 = arith.constant 0 : i32
    return %c0_i32, %c0_i32_0, %c0_i32_1 : i32, i32, i32
  }
  func.func @transform_5(%arg0: i32) -> i32 {
    %c0_i32 = arith.constant 0 : i32
    %c0_i32_0 = arith.constant 0 : i32
    return %c0_i32 : i32
  }
  func.func @transform_6(%arg0: i32) -> (i32, i32) {
    %c0_i32 = arith.constant 0 : i32
    %c0_i32_0 = arith.constant 0 : i32
    %c0_i32_1 = arith.constant 0 : i32
    return %c0_i32, %c0_i32_0 : i32, i32
  }
}

</mosaic_0001>

<llo_original>
// kernel: tpu_custom_call.1
$region0: #{tpu_custom_call.1}
  #allocation0 [shape = 'u32[]', space=smem, size = 0x4, offset = 0x4, fixed_abs, tag = 'smem constant byte address 0x4 - core index']
  #allocation1 [shape = 'u32[144,128]{1,0:T(1,128)}', space=vmem, size = 0x12000, scoped, tag = 'internal scratch']
  #allocation2 [shape = 'f32[1]{0:T(128)S(6)}', space=smem, size = 0x200, scoped, tag = 'scoped memory for tpu_custom_call.1']
  %s0 = inlined_call_operand.hbm [shape: bf16[32,128], index: 0, kind: input, shape index: {}]
  %s1 = inlined_call_operand.hbm [shape: bf16[128,1152], index: 1, kind: input, shape index: {}]
  %s2 = inlined_call_operand.vmem [shape: f32[1,1152], index: 2, kind: input, shape index: {}]
  %s3 = inlined_call_operand.vmem [shape: f32[1,128], index: 3, kind: input, shape index: {}]
  %s4 = inlined_call_operand.hbm [shape: f32[3,16,16], index: 4, kind: input, shape index: {}]
  %s5 = inlined_call_operand.<no memory space> [shape: f32[1], index: 5, kind: input, shape index: {}]
  %s6 = inlined_call_operand.hbm [shape: f32[32,128], index: 6, kind: output, shape index: {}]
  %s7 = sld [smem:[#allocation0]]
  $region46: #{tpu_custom_call.1} parent=0
    _
  %s9 = ssub.s32 1, %s7
  %s10 = scalar_select 0, %s9, %s7
  %11 = sst [smem:[#allocation2]] %s5
  $region1: #{tpu_custom_call.1} parent=0
    #allocation3 [shape = 'u8[8192]{0}', space=vmem, size = 0x2000, scoped, tag = 'input window, operand 0, single buffered']
    #allocation4 [shape = 's32[1]{0}', space=sflag, size = 0x4, scoped, tag = 'scoped memory for tpu_custom_call.1']
    #allocation5 [shape = 's32[1]{0}', space=sflag, size = 0x4, scoped, tag = 'scoped memory for tpu_custom_call.1']
    #allocation6 [shape = 'u8[294912]{0}', space=vmem, size = 0x48000, scoped, tag = 'input window, operand 1, single buffered']
    #allocation7 [shape = 's32[1]{0}', space=sflag, size = 0x4, scoped, tag = 'scoped memory for tpu_custom_call.1']
    #allocation8 [shape = 'u8[24576]{0}', space=vmem, size = 0x6000, scoped, tag = 'input window, operand 4, single buffered']
    #allocation9 [shape = 'u8[16384]{0}', space=vmem, size = 0x4000, scoped, tag = 'output window, operand 0, single buffered']
    %12 = vsyncpa [#allocation4], 0
    %13 = vsyncpa [#allocation7], 0
    %14 = vsyncpa [#allocation5], 0
    // Predicated region
    $region2: #{tpu_custom_call.1} parent=1 // pred_check
      _
    $region3: #{tpu_custom_call.1} parent=1 // pred_check_branch
      %16 = sbr.rel (0) target = $region5
    $region4: #{tpu_custom_call.1} parent=1 // pred_region
      %s18 = ssub.s32 256, 256
      %19 = vsyncadd [#allocation4], %s18
      %s20 = sshll.u32 [#allocation3], 4
      %s21 = int_to_ptr.vmem [resolvable:$true] %s20
      %26 = dma.hbm_to_vmem [thread:$0]  %s0, 256, %s21, [#allocation4], 64, 64, 4
    $region5: #{tpu_custom_call.1} parent=1 // pred_fallthru
      _
    // Predicated region
    $region6: #{tpu_custom_call.1} parent=1 // pred_check
      _
    $region7: #{tpu_custom_call.1} parent=1 // pred_check_branch
      %28 = sbr.rel (0) target = $region9
    $region8: #{tpu_custom_call.1} parent=1 // pred_region
      %s30 = ssub.s32 9216, 9216
      %31 = vsyncadd [#allocation7], %s30
      %s32 = sshll.u32 [#allocation6], 4
      %s33 = int_to_ptr.vmem [resolvable:$true] %s32
      %38 = dma.hbm_to_vmem [thread:$0]  %s1, 9216, %s33, [#allocation7], 576, 576, 36
    $region9: #{tpu_custom_call.1} parent=1 // pred_fallthru
      _
    // Predicated region
    $region10: #{tpu_custom_call.1} parent=1 // pred_check
      _
    $region11: #{tpu_custom_call.1} parent=1 // pred_check_branch
      %40 = sbr.rel (0) target = $region13
    $region12: #{tpu_custom_call.1} parent=1 // pred_region
      _
    $region13: #{tpu_custom_call.1} parent=1 // pred_fallthru
      _
    // Predicated region
    $region14: #{tpu_custom_call.1} parent=1 // pred_check
      _
    $region15: #{tpu_custom_call.1} parent=1 // pred_check_branch
      %42 = sbr.rel (0) target = $region17
    $region16: #{tpu_custom_call.1} parent=1 // pred_region
      _
    $region17: #{tpu_custom_call.1} parent=1 // pred_fallthru
      _
    // Predicated region
    $region18: #{tpu_custom_call.1} parent=1 // pred_check
      _
    $region19: #{tpu_custom_call.1} parent=1 // pred_check_branch
      %44 = sbr.rel (0) target = $region21
    $region20: #{tpu_custom_call.1} parent=1 // pred_region
      %s46 = ssub.s32 768, 768
      %47 = vsyncadd [#allocation7], %s46
      %s48 = sshll.u32 [#allocation8], 4
      %s49 = int_to_ptr.vmem [resolvable:$true] %s48
      %54 = dma.hbm_to_vmem [thread:$0]  %s4, 768, %s49, [#allocation7], 128, 128, 8
    $region21: #{tpu_custom_call.1} parent=1 // pred_fallthru
      _
    // Predicated region
    $region22: #{tpu_custom_call.1} parent=1 // pred_check
      _
    $region23: #{tpu_custom_call.1} parent=1 // pred_check_branch
      %56 = sbr.rel (0) target = $region25
    $region24: #{tpu_custom_call.1} parent=1 // pred_region
      _
    $region25: #{tpu_custom_call.1} parent=1 // pred_fallthru
      _
    // Predicated region
    $region26: #{tpu_custom_call.1} parent=1 // pred_check
      _
    $region27: #{tpu_custom_call.1} parent=1 // pred_check_branch
      %58 = sbr.rel (0) target = $region29
    $region28: #{tpu_custom_call.1} parent=1 // pred_region
      %59 = dma.done [#allocation4], 256
    $region29: #{tpu_custom_call.1} parent=1 // pred_fallthru
      _
    // Predicated region
    $region30: #{tpu_custom_call.1} parent=1 // pred_check
      _
    $region31: #{tpu_custom_call.1} parent=1 // pred_check_branch
      %61 = sbr.rel (0) target = $region33
    $region32: #{tpu_custom_call.1} parent=1 // pred_region
      %62 = dma.done [#allocation7], 9216
    $region33: #{tpu_custom_call.1} parent=1 // pred_fallthru
      _
    // Predicated region
    $region34: #{tpu_custom_call.1} parent=1 // pred_check
      _
    $region35: #{tpu_custom_call.1} parent=1 // pred_check_branch
      %64 = sbr.rel (0) target = $region37
    $region36: #{tpu_custom_call.1} parent=1 // pred_region
      %65 = dma.done [#allocation7], 768
    $region37: #{tpu_custom_call.1} parent=1 // pred_fallthru
      _
    %s67 = sld [smem:[#allocation2]]
    %v68 = vld [vmem:[#allocation3] sm:$0xf]
    %v69 = vld [vmem:[#allocation3 + $0x4] sm:$0xf]
    %v70 = vld [vmem:[#allocation3 + $0x8] sm:$0xf]
    %v71 = vld [vmem:[#allocation3 + $0xc] sm:$0xf]
    %v72 = vld [vmem:[#allocation6] sm:$0xff]
    %v73 = vld [vmem:[#allocation6 + $0x8] sm:$0xff]
    %v74 = vld [vmem:[#allocation6 + $0x10] sm:$0xff]
    %v75 = vld [vmem:[#allocation6 + $0x18] sm:$0xff]
    %v76 = vld [vmem:[#allocation6 + $0x20] sm:$0xf]
    %v77 = vld [vmem:[#allocation6 + $0x24] sm:$0xff]
    %v78 = vld [vmem:[#allocation6 + $0x2c] sm:$0xff]
    %v79 = vld [vmem:[#allocation6 + $0x34] sm:$0xff]
    %v80 = vld [vmem:[#allocation6 + $0x3c] sm:$0xff]
    %v81 = vld [vmem:[#allocation6 + $0x44] sm:$0xf]
    %v82 = vld [vmem:[#allocation6 + $0x48] sm:$0xff]
    %v83 = vld [vmem:[#allocation6 + $0x50] sm:$0xff]
    %v84 = vld [vmem:[#allocation6 + $0x58] sm:$0xff]
    %v85 = vld [vmem:[#allocation6 + $0x60] sm:$0xff]
    %v86 = vld [vmem:[#allocation6 + $0x68] sm:$0xf]
    %v87 = vld [vmem:[#allocation6 + $0x6c] sm:$0xff]
    %v88 = vld [vmem:[#allocation6 + $0x74] sm:$0xff]
    %v89 = vld [vmem:[#allocation6 + $0x7c] sm:$0xff]
    %v90 = vld [vmem:[#allocation6 + $0x84] sm:$0xff]
    %v91 = vld [vmem:[#allocation6 + $0x8c] sm:$0xf]
    %v92 = vld [vmem:[#allocation6 + $0x90] sm:$0xff]
    %v93 = vld [vmem:[#allocation6 + $0x98] sm:$0xff]
    %v94 = vld [vmem:[#allocation6 + $0xa0] sm:$0xff]
    %v95 = vld [vmem:[#allocation6 + $0xa8] sm:$0xff]
    %v96 = vld [vmem:[#allocation6 + $0xb0] sm:$0xf]
    %v97 = vld [vmem:[#allocation6 + $0xb4] sm:$0xff]
    %v98 = vld [vmem:[#allocation6 + $0xbc] sm:$0xff]
    %v99 = vld [vmem:[#allocation6 + $0xc4] sm:$0xff]
    %v100 = vld [vmem:[#allocation6 + $0xcc] sm:$0xff]
    %v101 = vld [vmem:[#allocation6 + $0xd4] sm:$0xf]
    %v102 = vld [vmem:[#allocation6 + $0xd8] sm:$0xff]
    %v103 = vld [vmem:[#allocation6 + $0xe0] sm:$0xff]
    %v104 = vld [vmem:[#allocation6 + $0xe8] sm:$0xff]
    %v105 = vld [vmem:[#allocation6 + $0xf0] sm:$0xff]
    %v106 = vld [vmem:[#allocation6 + $0xf8] sm:$0xf]
    %v107 = vld [vmem:[#allocation6 + $0xfc] sm:$0xff]
    %v108 = vld [vmem:[#allocation6 + $0x104] sm:$0xff]
    %v109 = vld [vmem:[#allocation6 + $0x10c] sm:$0xff]
    %v110 = vld [vmem:[#allocation6 + $0x114] sm:$0xff]
    %v111 = vld [vmem:[#allocation6 + $0x11c] sm:$0xf]
    %v112 = vld [vmem:[#allocation6 + $0x120] sm:$0xff]
    %v113 = vld [vmem:[#allocation6 + $0x128] sm:$0xff]
    %v114 = vld [vmem:[#allocation6 + $0x130] sm:$0xff]
    %v115 = vld [vmem:[#allocation6 + $0x138] sm:$0xff]
    %v116 = vld [vmem:[#allocation6 + $0x140] sm:$0xf]
    %v117 = vld [vmem:[#allocation6 + $0x144] sm:$0xff]
    %v118 = vld [vmem:[#allocation6 + $0x14c] sm:$0xff]
    %v119 = vld [vmem:[#allocation6 + $0x154] sm:$0xff]
    %v120 = vld [vmem:[#allocation6 + $0x15c] sm:$0xff]
    %v121 = vld [vmem:[#allocation6 + $0x164] sm:$0xf]
    %v122 = vld [vmem:[#allocation6 + $0x168] sm:$0xff]
    %v123 = vld [vmem:[#allocation6 + $0x170] sm:$0xff]
    %v124 = vld [vmem:[#allocation6 + $0x178] sm:$0xff]
    %v125 = vld [vmem:[#allocation6 + $0x180] sm:$0xff]
    %v126 = vld [vmem:[#allocation6 + $0x188] sm:$0xf]
    %v127 = vld [vmem:[#allocation6 + $0x18c] sm:$0xff]
    %v128 = vld [vmem:[#allocation6 + $0x194] sm:$0xff]
    %v129 = vld [vmem:[#allocation6 + $0x19c] sm:$0xff]
    %v130 = vld [vmem:[#allocation6 + $0x1a4] sm:$0xff]
    %v131 = vld [vmem:[#allocation6 + $0x1ac] sm:$0xf]
    %v132 = vld [vmem:[#allocation6 + $0x1b0] sm:$0xff]
    %v133 = vld [vmem:[#allocation6 + $0x1b8] sm:$0xff]
    %v134 = vld [vmem:[#allocation6 + $0x1c0] sm:$0xff]
    %v135 = vld [vmem:[#allocation6 + $0x1c8] sm:$0xff]
    %v136 = vld [vmem:[#allocation6 + $0x1d0] sm:$0xf]
    %v137 = vld [vmem:[#allocation6 + $0x1d4] sm:$0xff]
    %v138 = vld [vmem:[#allocation6 + $0x1dc] sm:$0xff]
    %v139 = vld [vmem:[#allocation6 + $0x1e4] sm:$0xff]
    %v140 = vld [vmem:[#allocation6 + $0x1ec] sm:$0xff]
    %v141 = vld [vmem:[#allocation6 + $0x1f4] sm:$0xf]
    %v142 = vld [vmem:[#allocation6 + $0x1f8] sm:$0xff]
    %v143 = vld [vmem:[#allocation6 + $0x200] sm:$0xff]
    %v144 = vld [vmem:[#allocation6 + $0x208] sm:$0xff]
    %v145 = vld [vmem:[#allocation6 + $0x210] sm:$0xff]
    %v146 = vld [vmem:[#allocation6 + $0x218] sm:$0xf]
    %v147 = vld [vmem:[#allocation6 + $0x21c] sm:$0xff]
    %v148 = vld [vmem:[#allocation6 + $0x224] sm:$0xff]
    %v149 = vld [vmem:[#allocation6 + $0x22c] sm:$0xff]
    %v150 = vld [vmem:[#allocation6 + $0x234] sm:$0xff]
    %v151 = vld [vmem:[#allocation6 + $0x23c] sm:$0xf]
    %v152 = vld [vmem:[%s2] sm:$0xff]
    %v153 = vld [vmem:[%s2 + $0x8] sm:$0x1]
    %v156 = vlaneseq
    %v157 = vshrl.u32 %v156, 7
    %v158 = vsub.s32 0, %v157
    %v159 = vrot.slane %v152, %v158
    %v160 = vlaneseq
    %v161 = vshrl.u32 %v160, 7
    %v162 = vsub.s32 1, %v161
    %v163 = vrot.slane %v152, %v162
    %v164 = vlaneseq
    %v165 = vshrl.u32 %v164, 7
    %v166 = vsub.s32 2, %v165
    %v167 = vrot.slane %v152, %v166
    %v168 = vlaneseq
    %v169 = vshrl.u32 %v168, 7
    %v170 = vsub.s32 3, %v169
    %v171 = vrot.slane %v152, %v170
    %v172 = vlaneseq
    %v173 = vshrl.u32 %v172, 7
    %v174 = vsub.s32 4, %v173
    %v175 = vrot.slane %v152, %v174
    %v176 = vlaneseq
    %v177 = vshrl.u32 %v176, 7
    %v178 = vsub.s32 5, %v177
    %v179 = vrot.slane %v152, %v178
    %v180 = vlaneseq
    %v181 = vshrl.u32 %v180, 7
    %v182 = vsub.s32 6, %v181
    %v183 = vrot.slane %v152, %v182
    %v184 = vlaneseq
    %v185 = vshrl.u32 %v184, 7
    %v186 = vsub.s32 7, %v185
    %v187 = vrot.slane %v152, %v186
    %v188 = vlaneseq
    %v189 = vshrl.u32 %v188, 7
    %v190 = vsub.s32 0, %v189
    %v191 = vrot.slane %v153, %v190
    %v205 = vunpack.c.l.b16 %v68
    %v206 = vunpack.c.l.b16 %v69
    %v207 = vunpack.c.l.b16 %v70
    %v208 = vunpack.c.l.b16 %v71
    %v209 = vpack.c.b16 %v206, %v205
    %v210 = vpack.c.b16 %v208, %v207
    %v293 = vunpack.c.l.b16 %v72
    %v294 = vunpack.c.h.b16 %v72
    %v295 = vunpack.c.l.b16 %v73
    %v296 = vunpack.c.h.b16 %v73
    %v297 = vunpack.c.l.b16 %v74
    %v298 = vunpack.c.h.b16 %v74
    %v299 = vunpack.c.l.b16 %v75
    %v300 = vunpack.c.h.b16 %v75
    %v301 = vunpack.c.l.b16 %v76
    %v302 = vunpack.c.l.b16 %v77
    %v303 = vunpack.c.h.b16 %v77
    %v304 = vunpack.c.l.b16 %v78
    %v305 = vunpack.c.h.b16 %v78
    %v306 = vunpack.c.l.b16 %v79
    %v307 = vunpack.c.h.b16 %v79
    %v308 = vunpack.c.l.b16 %v80
    %v309 = vunpack.c.h.b16 %v80
    %v310 = vunpack.c.l.b16 %v81
    %v311 = vunpack.c.l.b16 %v82
    %v312 = vunpack.c.h.b16 %v82
    %v313 = vunpack.c.l.b16 %v83
    %v314 = vunpack.c.h.b16 %v83
    %v315 = vunpack.c.l.b16 %v84
    %v316 = vunpack.c.h.b16 %v84
    %v317 = vunpack.c.l.b16 %v85
    %v318 = vunpack.c.h.b16 %v85
    %v319 = vunpack.c.l.b16 %v86
    %v320 = vunpack.c.l.b16 %v87
    %v321 = vunpack.c.h.b16 %v87
    %v322 = vunpack.c.l.b16 %v88
    %v323 = vunpack.c.h.b16 %v88
    %v324 = vunpack.c.l.b16 %v89
    %v325 = vunpack.c.h.b16 %v89
    %v326 = vunpack.c.l.b16 %v90
    %v327 = vunpack.c.h.b16 %v90
    %v328 = vunpack.c.l.b16 %v91
    %v329 = vunpack.c.l.b16 %v92
    %v330 = vunpack.c.h.b16 %v92
    %v331 = vunpack.c.l.b16 %v93
    %v332 = vunpack.c.h.b16 %v93
    %v333 = vunpack.c.l.b16 %v94
    %v334 = vunpack.c.h.b16 %v94
    %v335 = vunpack.c.l.b16 %v95
    %v336 = vunpack.c.h.b16 %v95
    %v337 = vunpack.c.l.b16 %v96
    %v338 = vunpack.c.l.b16 %v97
    %v339 = vunpack.c.h.b16 %v97
    %v340 = vunpack.c.l.b16 %v98
    %v341 = vunpack.c.h.b16 %v98
    %v342 = vunpack.c.l.b16 %v99
    %v343 = vunpack.c.h.b16 %v99
    %v344 = vunpack.c.l.b16 %v100
    %v345 = vunpack.c.h.b16 %v100
    %v346 = vunpack.c.l.b16 %v101
    %v347 = vunpack.c.l.b16 %v102
    %v348 = vunpack.c.h.b16 %v102
    %v349 = vunpack.c.l.b16 %v103
    %v350 = vunpack.c.h.b16 %v103
    %v351 = vunpack.c.l.b16 %v104
    %v352 = vunpack.c.h.b16 %v104
    %v353 = vunpack.c.l.b16 %v105
    %v354 = vunpack.c.h.b16 %v105
    %v355 = vunpack.c.l.b16 %v106
    %v356 = vunpack.c.l.b16 %v107
    %v357 = vunpack.c.h.b16 %v107
    %v358 = vunpack.c.l.b16 %v108
    %v359 = vunpack.c.h.b16 %v108
    %v360 = vunpack.c.l.b16 %v109
    %v361 = vunpack.c.h.b16 %v109
    %v362 = vunpack.c.l.b16 %v110
    %v363 = vunpack.c.h.b16 %v110
    %v364 = vunpack.c.l.b16 %v111
    %v365 = vunpack.c.l.b16 %v112
    %v366 = vunpack.c.h.b16 %v112
    %v367 = vunpack.c.l.b16 %v113
    %v368 = vunpack.c.h.b16 %v113
    %v369 = vunpack.c.l.b16 %v114
    %v370 = vunpack.c.h.b16 %v114
    %v371 = vunpack.c.l.b16 %v115
    %v372 = vunpack.c.h.b16 %v115
    %v373 = vunpack.c.l.b16 %v116
    %v374 = vunpack.c.l.b16 %v117
    %v375 = vunpack.c.h.b16 %v117
    %v376 = vunpack.c.l.b16 %v118
    %v377 = vunpack.c.h.b16 %v118
    %v378 = vunpack.c.l.b16 %v119
    %v379 = vunpack.c.h.b16 %v119
    %v380 = vunpack.c.l.b16 %v120
    %v381 = vunpack.c.h.b16 %v120
    %v382 = vunpack.c.l.b16 %v121
    %v383 = vunpack.c.l.b16 %v122
    %v384 = vunpack.c.h.b16 %v122
    %v385 = vunpack.c.l.b16 %v123
    %v386 = vunpack.c.h.b16 %v123
    %v387 = vunpack.c.l.b16 %v124
    %v388 = vunpack.c.h.b16 %v124
    %v389 = vunpack.c.l.b16 %v125
    %v390 = vunpack.c.h.b16 %v125
    %v391 = vunpack.c.l.b16 %v126
    %v392 = vunpack.c.l.b16 %v127
    %v393 = vunpack.c.h.b16 %v127
    %v394 = vunpack.c.l.b16 %v128
    %v395 = vunpack.c.h.b16 %v128
    %v396 = vunpack.c.l.b16 %v129
    %v397 = vunpack.c.h.b16 %v129
    %v398 = vunpack.c.l.b16 %v130
    %v399 = vunpack.c.h.b16 %v130
    %v400 = vunpack.c.l.b16 %v131
    %v401 = vunpack.c.l.b16 %v132
    %v402 = vunpack.c.h.b16 %v132
    %v403 = vunpack.c.l.b16 %v133
    %v404 = vunpack.c.h.b16 %v133
    %v405 = vunpack.c.l.b16 %v134
    %v406 = vunpack.c.h.b16 %v134
    %v407 = vunpack.c.l.b16 %v135
    %v408 = vunpack.c.h.b16 %v135
    %v409 = vunpack.c.l.b16 %v136
    %v410 = vunpack.c.l.b16 %v137
    %v411 = vunpack.c.h.b16 %v137
    %v412 = vunpack.c.l.b16 %v138
    %v413 = vunpack.c.h.b16 %v138
    %v414 = vunpack.c.l.b16 %v139
    %v415 = vunpack.c.h.b16 %v139
    %v416 = vunpack.c.l.b16 %v140
    %v417 = vunpack.c.h.b16 %v140
    %v418 = vunpack.c.l.b16 %v141
    %v419 = vunpack.c.l.b16 %v142
    %v420 = vunpack.c.h.b16 %v142
    %v421 = vunpack.c.l.b16 %v143
    %v422 = vunpack.c.h.b16 %v143
    %v423 = vunpack.c.l.b16 %v144
    %v424 = vunpack.c.h.b16 %v144
    %v425 = vunpack.c.l.b16 %v145
    %v426 = vunpack.c.h.b16 %v145
    %v427 = vunpack.c.l.b16 %v146
    %v428 = vunpack.c.l.b16 %v147
    %v429 = vunpack.c.h.b16 %v147
    %v430 = vunpack.c.l.b16 %v148
    %v431 = vunpack.c.h.b16 %v148
    %v432 = vunpack.c.l.b16 %v149
    %v433 = vunpack.c.h.b16 %v149
    %v434 = vunpack.c.l.b16 %v150
    %v435 = vunpack.c.h.b16 %v150
    %v436 = vunpack.c.l.b16 %v151
    %v437 = vpack.c.b16 %v302, %v293
    %v438 = vpack.c.b16 %v303, %v294
    %v439 = vpack.c.b16 %v304, %v295
    %v440 = vpack.c.b16 %v305, %v296
    %v441 = vpack.c.b16 %v306, %v297
    %v442 = vpack.c.b16 %v307, %v298
    %v443 = vpack.c.b16 %v308, %v299
    %v444 = vpack.c.b16 %v309, %v300
    %v445 = vpack.c.b16 %v310, %v301
    %v446 = vpack.c.b16 %v320, %v311
    %v447 = vpack.c.b16 %v321, %v312
    %v448 = vpack.c.b16 %v322, %v313
    %v449 = vpack.c.b16 %v323, %v314
    %v450 = vpack.c.b16 %v324, %v315
    %v451 = vpack.c.b16 %v325, %v316
    %v452 = vpack.c.b16 %v326, %v317
    %v453 = vpack.c.b16 %v327, %v318
    %v454 = vpack.c.b16 %v328, %v319
    %v455 = vpack.c.b16 %v338, %v329
    %v456 = vpack.c.b16 %v339, %v330
    %v457 = vpack.c.b16 %v340, %v331
    %v458 = vpack.c.b16 %v341, %v332
    %v459 = vpack.c.b16 %v342, %v333
    %v460 = vpack.c.b16 %v343, %v334
    %v461 = vpack.c.b16 %v344, %v335
    %v462 = vpack.c.b16 %v345, %v336
    %v463 = vpack.c.b16 %v346, %v337
    %v464 = vpack.c.b16 %v356, %v347
    %v465 = vpack.c.b16 %v357, %v348
    %v466 = vpack.c.b16 %v358, %v349
    %v467 = vpack.c.b16 %v359, %v350
    %v468 = vpack.c.b16 %v360, %v351
    %v469 = vpack.c.b16 %v361, %v352
    %v470 = vpack.c.b16 %v362, %v353
    %v471 = vpack.c.b16 %v363, %v354
    %v472 = vpack.c.b16 %v364, %v355
    %v473 = vpack.c.b16 %v374, %v365
    %v474 = vpack.c.b16 %v375, %v366
    %v475 = vpack.c.b16 %v376, %v367
    %v476 = vpack.c.b16 %v377, %v368
    %v477 = vpack.c.b16 %v378, %v369
    %v478 = vpack.c.b16 %v379, %v370
    %v479 = vpack.c.b16 %v380, %v371
    %v480 = vpack.c.b16 %v381, %v372
    %v481 = vpack.c.b16 %v382, %v373
    %v482 = vpack.c.b16 %v392, %v383
    %v483 = vpack.c.b16 %v393, %v384
    %v484 = vpack.c.b16 %v394, %v385
    %v485 = vpack.c.b16 %v395, %v386
    %v486 = vpack.c.b16 %v396, %v387
    %v487 = vpack.c.b16 %v397, %v388
    %v488 = vpack.c.b16 %v398, %v389
    %v489 = vpack.c.b16 %v399, %v390
    %v490 = vpack.c.b16 %v400, %v391
    %v491 = vpack.c.b16 %v410, %v401
    %v492 = vpack.c.b16 %v411, %v402
    %v493 = vpack.c.b16 %v412, %v403
    %v494 = vpack.c.b16 %v413, %v404
    %v495 = vpack.c.b16 %v414, %v405
    %v496 = vpack.c.b16 %v415, %v406
    %v497 = vpack.c.b16 %v416, %v407
    %v498 = vpack.c.b16 %v417, %v408
    %v499 = vpack.c.b16 %v418, %v409
    %v500 = vpack.c.b16 %v428, %v419
    %v501 = vpack.c.b16 %v429, %v420
    %v502 = vpack.c.b16 %v430, %v421
    %v503 = vpack.c.b16 %v431, %v422
    %v504 = vpack.c.b16 %v432, %v423
    %v505 = vpack.c.b16 %v433, %v424
    %v506 = vpack.c.b16 %v434, %v425
    %v507 = vpack.c.b16 %v435, %v426
    %v508 = vpack.c.b16 %v436, %v427
    %581 = vmatprep.subr.bf16.mxu0 %v438
    %582 = vmatpush1.bf16.msra.mxu0 %v437
    %583 = vmatprep.subr.bf16.mxu0 %v447
    %584 = vmatpush1.bf16.msra.mxu0 %v446
    %585 = vmatprep.subr.bf16.mxu0 %v456
    %586 = vmatpush1.bf16.msra.mxu0 %v455
    %587 = vmatprep.subr.bf16.mxu0 %v465
    %588 = vmatpush1.bf16.msra.mxu0 %v464
    %589 = vmatprep.subr.bf16.mxu0 %v474
    %590 = vmatpush1.bf16.msra.mxu0 %v473
    %591 = vmatprep.subr.bf16.mxu0 %v483
    %592 = vmatpush1.bf16.msra.mxu0 %v482
    %593 = vmatprep.subr.bf16.mxu0 %v492
    %594 = vmatpush1.bf16.msra.mxu0 %v491
    %595 = vmatprep.subr.bf16.mxu0 %v501
    %596 = vmatpush1.bf16.msra.mxu0 %v500
    %597 = vmatprep.subr.bf16.mxu0 0
    %598 = vmatpush1.bf16.msra.mxu0 0
    %599 = vmatprep.subr.bf16.mxu0 0
    %600 = vmatpush1.bf16.msra.mxu0 0
    %601 = vmatprep.subr.bf16.mxu0 0
    %602 = vmatpush1.bf16.msra.mxu0 0
    %603 = vmatprep.subr.bf16.mxu0 0
    %604 = vmatpush1.bf16.msra.mxu0 0
    %605 = vmatprep.subr.bf16.mxu0 0
    %606 = vmatpush1.bf16.msra.mxu0 0
    %607 = vmatprep.subr.bf16.mxu0 0
    %608 = vmatpush1.bf16.msra.mxu0 0
    %609 = vmatprep.subr.bf16.mxu0 0
    %610 = vmatpush1.bf16.msra.mxu0 0
    %611 = vmatprep.subr.bf16.mxu0 0
    %612 = vmatpush1.bf16.msra.mxu0 0
    %613 = vmatprep.mubr.bf16.mxu0 0
    %614 = vmatmul.mubr.bf16.gmra.mrb[0].mxu0 %v209
    %v615 = vpop.f32.mrb[0].mxu0
    %v616 = vadd.f32 %v159, %v615
    %v617 = vpop.f32.mrb[0].mxu0
    %v618 = vadd.f32 %v163, %v617
    %v619 = vpop.f32.mrb[0].mxu0
    %v620 = vadd.f32 %v159, %v619
    %v621 = vpop.f32.mrb[0].mxu0
    %v622 = vadd.f32 %v163, %v621
    %623 = vmatprep.mubr.bf16.mxu0 0
    %624 = vmatmul.mubr.bf16.gmra.mrb[0].mxu0 %v210
    %v625 = vpop.f32.mrb[0].mxu0
    %v626 = vadd.f32 %v159, %v625
    %v627 = vpop.f32.mrb[0].mxu0
    %v628 = vadd.f32 %v163, %v627
    %v629 = vpop.f32.mrb[0].mxu0
    %v630 = vadd.f32 %v159, %v629
    %v631 = vpop.f32.mrb[0].mxu0
    %v632 = vadd.f32 %v163, %v631
    %633 = vdwg.mxu0
    %634 = vmatprep.subr.bf16.mxu0 %v440
    %635 = vmatpush1.bf16.msra.mxu0 %v439
    %636 = vmatprep.subr.bf16.mxu0 %v449
    %637 = vmatpush1.bf16.msra.mxu0 %v448
    %638 = vmatprep.subr.bf16.mxu0 %v458
    %639 = vmatpush1.bf16.msra.mxu0 %v457
    %640 = vmatprep.subr.bf16.mxu0 %v467
    %641 = vmatpush1.bf16.msra.mxu0 %v466
    %642 = vmatprep.subr.bf16.mxu0 %v476
    %643 = vmatpush1.bf16.msra.mxu0 %v475
    %644 = vmatprep.subr.bf16.mxu0 %v485
    %645 = vmatpush1.bf16.msra.mxu0 %v484
    %646 = vmatprep.subr.bf16.mxu0 %v494
    %647 = vmatpush1.bf16.msra.mxu0 %v493
    %648 = vmatprep.subr.bf16.mxu0 %v503
    %649 = vmatpush1.bf16.msra.mxu0 %v502
    %650 = vmatprep.subr.bf16.mxu0 0
    %651 = vmatpush1.bf16.msra.mxu0 0
    %652 = vmatprep.subr.bf16.mxu0 0
    %653 = vmatpush1.bf16.msra.mxu0 0
    %654 = vmatprep.subr.bf16.mxu0 0
    %655 = vmatpush1.bf16.msra.mxu0 0
    %656 = vmatprep.subr.bf16.mxu0 0
    %657 = vmatpush1.bf16.msra.mxu0 0
    %658 = vmatprep.subr.bf16.mxu0 0
    %659 = vmatpush1.bf16.msra.mxu0 0
    %660 = vmatprep.subr.bf16.mxu0 0
    %661 = vmatpush1.bf16.msra.mxu0 0
    %662 = vmatprep.subr.bf16.mxu0 0
    %663 = vmatpush1.bf16.msra.mxu0 0
    %664 = vmatprep.subr.bf16.mxu0 0
    %665 = vmatpush1.bf16.msra.mxu0 0
    %666 = vmatprep.mubr.bf16.mxu0 0
    %667 = vmatmul.mubr.bf16.gmra.mrb[0].mxu0 %v209
    %v668 = vpop.f32.mrb[0].mxu0
    %v669 = vadd.f32 %v167, %v668
    %v670 = vpop.f32.mrb[0].mxu0
    %v671 = vadd.f32 %v171, %v670
    %v672 = vpop.f32.mrb[0].mxu0
    %v673 = vadd.f32 %v167, %v672
    %v674 = vpop.f32.mrb[0].mxu0
    %v675 = vadd.f32 %v171, %v674
    %676 = vmatprep.mubr.bf16.mxu0 0
    %677 = vmatmul.mubr.bf16.gmra.mrb[0].mxu0 %v210
    %v678 = vpop.f32.mrb[0].mxu0
    %v679 = vadd.f32 %v167, %v678
    %v680 = vpop.f32.mrb[0].mxu0
    %v681 = vadd.f32 %v171, %v680
    %v682 = vpop.f32.mrb[0].mxu0
    %v683 = vadd.f32 %v167, %v682
    %v684 = vpop.f32.mrb[0].mxu0
    %v685 = vadd.f32 %v171, %v684
    %686 = vdwg.mxu0
    %687 = vmatprep.subr.bf16.mxu0 %v442
    %688 = vmatpush1.bf16.msra.mxu0 %v441
    %689 = vmatprep.subr.bf16.mxu0 %v451
    %690 = vmatpush1.bf16.msra.mxu0 %v450
    %691 = vmatprep.subr.bf16.mxu0 %v460
    %692 = vmatpush1.bf16.msra.mxu0 %v459
    %693 = vmatprep.subr.bf16.mxu0 %v469
    %694 = vmatpush1.bf16.msra.mxu0 %v468
    %695 = vmatprep.subr.bf16.mxu0 %v478
    %696 = vmatpush1.bf16.msra.mxu0 %v477
    %697 = vmatprep.subr.bf16.mxu0 %v487
    %698 = vmatpush1.bf16.msra.mxu0 %v486
    %699 = vmatprep.subr.bf16.mxu0 %v496
    %700 = vmatpush1.bf16.msra.mxu0 %v495
    %701 = vmatprep.subr.bf16.mxu0 %v505
    %702 = vmatpush1.bf16.msra.mxu0 %v504
    %703 = vmatprep.subr.bf16.mxu0 0
    %704 = vmatpush1.bf16.msra.mxu0 0
    %705 = vmatprep.subr.bf16.mxu0 0
    %706 = vmatpush1.bf16.msra.mxu0 0
    %707 = vmatprep.subr.bf16.mxu0 0
    %708 = vmatpush1.bf16.msra.mxu0 0
    %709 = vmatprep.subr.bf16.mxu0 0
    %710 = vmatpush1.bf16.msra.mxu0 0
    %711 = vmatprep.subr.bf16.mxu0 0
    %712 = vmatpush1.bf16.msra.mxu0 0
    %713 = vmatprep.subr.bf16.mxu0 0
    %714 = vmatpush1.bf16.msra.mxu0 0
    %715 = vmatprep.subr.bf16.mxu0 0
    %716 = vmatpush1.bf16.msra.mxu0 0
    %717 = vmatprep.subr.bf16.mxu0 0
    %718 = vmatpush1.bf16.msra.mxu0 0
    %719 = vmatprep.mubr.bf16.mxu0 0
    %720 = vmatmul.mubr.bf16.gmra.mrb[0].mxu0 %v209
    %v721 = vpop.f32.mrb[0].mxu0
    %v722 = vadd.f32 %v175, %v721
    %v723 = vpop.f32.mrb[0].mxu0
    %v724 = vadd.f32 %v179, %v723
    %v725 = vpop.f32.mrb[0].mxu0
    %v726 = vadd.f32 %v175, %v725
    %v727 = vpop.f32.mrb[0].mxu0
    %v728 = vadd.f32 %v179, %v727
    %729 = vmatprep.mubr.bf16.mxu0 0
    %730 = vmatmul.mubr.bf16.gmra.mrb[0].mxu0 %v210
    %v731 = vpop.f32.mrb[0].mxu0
    %v732 = vadd.f32 %v175, %v731
    %v733 = vpop.f32.mrb[0].mxu0
    %v734 = vadd.f32 %v179, %v733
    %v735 = vpop.f32.mrb[0].mxu0
    %v736 = vadd.f32 %v175, %v735
    %v737 = vpop.f32.mrb[0].mxu0
    %v738 = vadd.f32 %v179, %v737
    %739 = vdwg.mxu0
    %740 = vmatprep.subr.bf16.mxu0 %v444
    %741 = vmatpush1.bf16.msra.mxu0 %v443
    %742 = vmatprep.subr.bf16.mxu0 %v453
    %743 = vmatpush1.bf16.msra.mxu0 %v452
    %744 = vmatprep.subr.bf16.mxu0 %v462
    %745 = vmatpush1.bf16.msra.mxu0 %v461
    %746 = vmatprep.subr.bf16.mxu0 %v471
    %747 = vmatpush1.bf16.msra.mxu0 %v470
    %748 = vmatprep.subr.bf16.mxu0 %v480
    %749 = vmatpush1.bf16.msra.mxu0 %v479
    %750 = vmatprep.subr.bf16.mxu0 %v489
    %751 = vmatpush1.bf16.msra.mxu0 %v488
    %752 = vmatprep.subr.bf16.mxu0 %v498
    %753 = vmatpush1.bf16.msra.mxu0 %v497
    %754 = vmatprep.subr.bf16.mxu0 %v507
    %755 = vmatpush1.bf16.msra.mxu0 %v506
    %756 = vmatprep.subr.bf16.mxu0 0
    %757 = vmatpush1.bf16.msra.mxu0 0
    %758 = vmatprep.subr.bf16.mxu0 0
    %759 = vmatpush1.bf16.msra.mxu0 0
    %760 = vmatprep.subr.bf16.mxu0 0
    %761 = vmatpush1.bf16.msra.mxu0 0
    %762 = vmatprep.subr.bf16.mxu0 0
    %763 = vmatpush1.bf16.msra.mxu0 0
    %764 = vmatprep.subr.bf16.mxu0 0
    %765 = vmatpush1.bf16.msra.mxu0 0
    %766 = vmatprep.subr.bf16.mxu0 0
    %767 = vmatpush1.bf16.msra.mxu0 0
    %768 = vmatprep.subr.bf16.mxu0 0
    %769 = vmatpush1.bf16.msra.mxu0 0
    %770 = vmatprep.subr.bf16.mxu0 0
    %771 = vmatpush1.bf16.msra.mxu0 0
    %772 = vmatprep.mubr.bf16.mxu0 0
    %773 = vmatmul.mubr.bf16.gmra.mrb[0].mxu0 %v209
    %v774 = vpop.f32.mrb[0].mxu0
    %v775 = vadd.f32 %v183, %v774
    %v776 = vpop.f32.mrb[0].mxu0
    %v777 = vadd.f32 %v187, %v776
    %v778 = vpop.f32.mrb[0].mxu0
    %v779 = vadd.f32 %v183, %v778
    %v780 = vpop.f32.mrb[0].mxu0
    %v781 = vadd.f32 %v187, %v780
    %782 = vmatprep.mubr.bf16.mxu0 0
    %783 = vmatmul.mubr.bf16.gmra.mrb[0].mxu0 %v210
    %v784 = vpop.f32.mrb[0].mxu0
    %v785 = vadd.f32 %v183, %v784
    %v786 = vpop.f32.mrb[0].mxu0
    %v787 = vadd.f32 %v187, %v786
    %v788 = vpop.f32.mrb[0].mxu0
    %v789 = vadd.f32 %v183, %v788
    %v790 = vpop.f32.mrb[0].mxu0
    %v791 = vadd.f32 %v187, %v790
    %792 = vdwg.mxu0
    %793 = vmatprep.subr.bf16.mxu0 0
    %794 = vmatpush1.bf16.msra.mxu0 %v445
    %795 = vmatprep.subr.bf16.mxu0 0
    %796 = vmatpush1.bf16.msra.mxu0 %v454
    %797 = vmatprep.subr.bf16.mxu0 0
    %798 = vmatpush1.bf16.msra.mxu0 %v463
    %799 = vmatprep.subr.bf16.mxu0 0
    %800 = vmatpush1.bf16.msra.mxu0 %v472
    %801 = vmatprep.subr.bf16.mxu0 0
    %802 = vmatpush1.bf16.msra.mxu0 %v481
    %803 = vmatprep.subr.bf16.mxu0 0
    %804 = vmatpush1.bf16.msra.mxu0 %v490
    %805 = vmatprep.subr.bf16.mxu0 0
    %806 = vmatpush1.bf16.msra.mxu0 %v499
    %807 = vmatprep.subr.bf16.mxu0 0
    %808 = vmatpush1.bf16.msra.mxu0 %v508
    %809 = vmatprep.subr.bf16.mxu0 0
    %810 = vmatpush1.bf16.msra.mxu0 0
    %811 = vmatprep.subr.bf16.mxu0 0
    %812 = vmatpush1.bf16.msra.mxu0 0
    %813 = vmatprep.subr.bf16.mxu0 0
    %814 = vmatpush1.bf16.msra.mxu0 0
    %815 = vmatprep.subr.bf16.mxu0 0
    %816 = vmatpush1.bf16.msra.mxu0 0
    %817 = vmatprep.subr.bf16.mxu0 0
    %818 = vmatpush1.bf16.msra.mxu0 0
    %819 = vmatprep.subr.bf16.mxu0 0
    %820 = vmatpush1.bf16.msra.mxu0 0
    %821 = vmatprep.subr.bf16.mxu0 0
    %822 = vmatpush1.bf16.msra.mxu0 0
    %823 = vmatprep.subr.bf16.mxu0 0
    %824 = vmatpush1.bf16.msra.mxu0 0
    %825 = vmatprep.mubr.bf16.mxu0 0
    %826 = vmatmul.mubr.bf16.gmra.mrb[0].mxu0 %v209
    %v827 = vpop.f32.mrb[0].mxu0
    %v828 = vadd.f32 %v191, %v827
    %v829 = vpop.f32.mrb[0].mxu0
    %v830 = vpop.f32.mrb[0].mxu0
    %v831 = vadd.f32 %v191, %v830
    %v832 = vpop.f32.mrb[0].mxu0
    %833 = vmatprep.mubr.bf16.mxu0 0
    %834 = vmatmul.mubr.bf16.gmra.mrb[0].mxu0 %v210
    %v835 = vpop.f32.mrb[0].mxu0
    %v836 = vadd.f32 %v191, %v835
    %v837 = vpop.f32.mrb[0].mxu0
    %v838 = vpop.f32.mrb[0].mxu0
    %v839 = vadd.f32 %v191, %v838
    %v840 = vpop.f32.mrb[0].mxu0
    %841 = vdwg.mxu0
    %v842 = vld [vmem:[%s3] sm:$0x1]
    %843 = vmatprep.subr.mxu0 0.0
    %844 = vmatpush1.xpose.msra.mxu0 %v616
    %845 = vmatprep.subr.mxu0 0.0
    %846 = vmatpush1.xpose.msra.mxu0 %v620
    %847 = vmatprep.subr.mxu0 0.0
    %848 = vmatpush1.xpose.msra.mxu0 0.0
    %849 = vmatprep.subr.mxu0 0.0
    %850 = vmatpush1.xpose.msra.mxu0 0.0
    %851 = vmatprep.subr.mxu0 0.0
    %852 = vmatpush1.xpose.msra.mxu0 0.0
    %853 = vmatprep.subr.mxu0 0.0
    %854 = vmatpush1.xpose.msra.mxu0 0.0
    %855 = vmatprep.subr.mxu0 0.0
    %856 = vmatpush1.xpose.msra.mxu0 0.0
    %857 = vmatprep.subr.mxu0 0.0
    %858 = vmatpush1.xpose.msra.mxu0 0.0
    %859 = vmatprep.subr.mxu0 0.0
    %860 = vmatpush1.xpose.msra.mxu0 0.0
    %861 = vmatprep.subr.mxu0 0.0
    %862 = vmatpush1.xpose.msra.mxu0 0.0
    %863 = vmatprep.subr.mxu0 0.0
    %864 = vmatpush1.xpose.msra.mxu0 0.0
    %865 = vmatprep.subr.mxu0 0.0
    %866 = vmatpush1.xpose.msra.mxu0 0.0
    %867 = vmatprep.subr.mxu0 0.0
    %868 = vmatpush1.xpose.msra.mxu0 0.0
    %869 = vmatprep.subr.mxu0 0.0
    %870 = vmatpush1.xpose.msra.mxu0 0.0
    %871 = vmatprep.subr.mxu0 0.0
    %872 = vmatpush1.xpose.msra.mxu0 0.0
    %873 = vmatprep.subr.mxu0 0.0
    %874 = vmatpush1.xpose.msra.mxu0 0.0
    %875 = vmatprep.subr.mxu0 0.0
    %876 = vmatpush1.xpose.msra.mxu0 0.0
    %877 = vmatprep.subr.mxu0 0.0
    %878 = vmatpush1.xpose.msra.mxu0 0.0
    %879 = vmatprep.subr.mxu0 0.0
    %880 = vmatpush1.xpose.msra.mxu0 0.0
    %881 = vmatprep.subr.mxu0 0.0
    %882 = vmatpush1.xpose.msra.mxu0 0.0
    %883 = vmatprep.subr.mxu0 0.0
    %884 = vmatpush1.xpose.msra.mxu0 0.0
    %885 = vmatprep.subr.mxu0 0.0
    %886 = vmatpush1.xpose.msra.mxu0 0.0
    %887 = vmatprep.subr.mxu0 0.0
    %888 = vmatpush1.xpose.msra.mxu0 0.0
    %889 = vmatprep.subr.mxu0 0.0
    %890 = vmatpush1.xpose.msra.mxu0 0.0
    %891 = vmatprep.subr.mxu0 0.0
    %892 = vmatpush1.xpose.msra.mxu0 0.0
    %893 = vmatprep.subr.mxu0 0.0
    %894 = vmatpush1.xpose.msra.mxu0 0.0
    %895 = vmatprep.subr.mxu0 0.0
    %896 = vmatpush1.xpose.msra.mxu0 0.0
    %897 = vmatprep.subr.mxu0 0.0
    %898 = vmatpush1.xpose.msra.mxu0 0.0
    %899 = vmatprep.subr.mxu0 0.0
    %900 = vmatpush1.xpose.msra.mxu0 0.0
    %901 = vmatprep.subr.mxu0 0.0
    %902 = vmatpush1.xpose.msra.mxu0 0.0
    %903 = vmatprep.subr.mxu0 0.0
    %904 = vmatpush1.xpose.msra.mxu0 0.0
    %905 = vmatprep.subr.mxu0 0.0
    %906 = vmatpush1.xpose.msra.mxu0 0.0
    %907 = vmatprep.mubr.f32.mxu0 0.0
    %908 = vmatmul.mubr.f32.gmra.mrb[0].mxu0 %v618
    %v909 = vpop.f32.mrb[0].mxu0
    %v910 = vadd.f32 0.0, %v909
    %v911 = vpop.f32.mrb[0].mxu0
    %912 = vmatprep.mubr.f32.mxu0 0.0
    %913 = vmatmul.mubr.f32.gmra.mrb[0].mxu0 %v622
    %v914 = vpop.f32.mrb[0].mxu0
    %v915 = vadd.f32 0.0, %v914
    %v916 = vpop.f32.mrb[0].mxu0
    %917 = vdwg.mxu0
    %vm918 = vcmask 130048
    %v919 = vsel %vm918, %v910, -inf
    %920 = vmax.xlane.f32.xlu0 %v919
    %v921 = vpop.xlane.xlu0 %920
    %v922 = vsel %vm918, %v915, -inf
    %923 = vmax.xlane.f32.xlu0 %v922
    %v924 = vpop.xlane.xlu0 %923
    %v925 = vsub.f32 %v910, %v921
    %v926 = vsub.f32 %v915, %v924
    %v927 = vmul.f32 %v925, 1.442695
    %v928 = vpow.pop %v927
    %v929 = vmul.f32 %v926, 1.442695
    %v930 = vpow.pop %v929
    %v931 = vsel %vm918, %v928, 0.0
    %932 = vadd.xlane.f32.xlu0 %v931
    %v933 = vpop.xlane.xlu0 %932
    %v934 = vsel %vm918, %v930, 0.0
    %935 = vadd.xlane.f32.xlu0 %v934
    %v936 = vpop.xlane.xlu0 %935
    %v937 = vrcp.pop %v933
    %v938 = vrcp.pop %v936
    %v939 = vmul.f32 %v928, %v937
    %v940 = vmul.f32 %v930, %v938
    %v941 = vld [vmem:[#allocation8] sm:$0xff]
    %v942 = vld [vmem:[#allocation8 + $0x8] sm:$0xff]
    %v943 = vstv %s67
    %v944 = vmul.f32 %v939, %v943
    %v945 = vmul.f32 %v940, %v943
    %v946 = vadd.f32 %v941, %v944
    %v947 = vadd.f32 %v942, %v945
    %v949 = vsel %vm918, %v946, 0
    %v952 = vsel %vm918, %v947, 0
    %954 = vmatprep.subr.mxu0 0.0
    %955 = vmatpush1.msra.mxu0 %v669
    %956 = vmatprep.subr.mxu0 0.0
    %957 = vmatpush1.msra.mxu0 %v673
    %958 = vmatprep.subr.mxu0 0.0
    %959 = vmatpush1.msra.mxu0 0.0
    %960 = vmatprep.subr.mxu0 0.0
    %961 = vmatpush1.msra.mxu0 0.0
    %962 = vmatprep.subr.mxu0 0.0
    %963 = vmatpush1.msra.mxu0 0.0
    %964 = vmatprep.subr.mxu0 0.0
    %965 = vmatpush1.msra.mxu0 0.0
    %966 = vmatprep.subr.mxu0 0.0
    %967 = vmatpush1.msra.mxu0 0.0
    %968 = vmatprep.subr.mxu0 0.0
    %969 = vmatpush1.msra.mxu0 0.0
    %970 = vmatprep.subr.mxu0 0.0
    %971 = vmatpush1.msra.mxu0 0.0
    %972 = vmatprep.subr.mxu0 0.0
    %973 = vmatpush1.msra.mxu0 0.0
    %974 = vmatprep.subr.mxu0 0.0
    %975 = vmatpush1.msra.mxu0 0.0
    %976 = vmatprep.subr.mxu0 0.0
    %977 = vmatpush1.msra.mxu0 0.0
    %978 = vmatprep.subr.mxu0 0.0
    %979 = vmatpush1.msra.mxu0 0.0
    %980 = vmatprep.subr.mxu0 0.0
    %981 = vmatpush1.msra.mxu0 0.0
    %982 = vmatprep.subr.mxu0 0.0
    %983 = vmatpush1.msra.mxu0 0.0
    %984 = vmatprep.subr.mxu0 0.0
    %985 = vmatpush1.msra.mxu0 0.0
    %986 = vmatprep.subr.mxu0 0.0
    %987 = vmatpush1.msra.mxu0 0.0
    %988 = vmatprep.subr.mxu0 0.0
    %989 = vmatpush1.msra.mxu0 0.0
    %990 = vmatprep.subr.mxu0 0.0
    %991 = vmatpush1.msra.mxu0 0.0
    %992 = vmatprep.subr.mxu0 0.0
    %993 = vmatpush1.msra.mxu0 0.0
    %994 = vmatprep.subr.mxu0 0.0
    %995 = vmatpush1.msra.mxu0 0.0
    %996 = vmatprep.subr.mxu0 0.0
    %997 = vmatpush1.msra.mxu0 0.0
    %998 = vmatprep.subr.mxu0 0.0
    %999 = vmatpush1.msra.mxu0 0.0
    %1000 = vmatprep.subr.mxu0 0.0
    %1001 = vmatpush1.msra.mxu0 0.0
    %1002 = vmatprep.subr.mxu0 0.0
    %1003 = vmatpush1.msra.mxu0 0.0
    %1004 = vmatprep.subr.mxu0 0.0
    %1005 = vmatpush1.msra.mxu0 0.0
    %1006 = vmatprep.subr.mxu0 0.0
    %1007 = vmatpush1.msra.mxu0 0.0
    %1008 = vmatprep.subr.mxu0 0.0
    %1009 = vmatpush1.msra.mxu0 0.0
    %1010 = vmatprep.subr.mxu0 0.0
    %1011 = vmatpush1.msra.mxu0 0.0
    %1012 = vmatprep.subr.mxu0 0.0
    %1013 = vmatpush1.msra.mxu0 0.0
    %1014 = vmatprep.subr.mxu0 0.0
    %1015 = vmatpush1.msra.mxu0 0.0
    %1016 = vmatprep.subr.mxu0 0.0
    %1017 = vmatpush1.msra.mxu0 0.0
    %1018 = vmatprep.mubr.f32.mxu0 0.0
    %1019 = vmatmul.mubr.f32.gmra.mrb[0].mxu0 %v949
    %v1020 = vpop.f32.mrb[0].mxu0
    %v1021 = vadd.f32 0.0, %v1020
    %v1022 = vpop.f32.mrb[0].mxu0
    %1023 = vmatprep.mubr.f32.mxu0 0.0
    %1024 = vmatmul.mubr.f32.gmra.mrb[0].mxu0 %v952
    %v1025 = vpop.f32.mrb[0].mxu0
    %v1026 = vadd.f32 0.0, %v1025
    %v1027 = vpop.f32.mrb[0].mxu0
    %1028 = vdwg.mxu0
    %v1030 = vlaneseq
    %v1031 = vshrl.u32 %v1030, 7
    %v1032 = vsub.s32 0, %v1031
    %v1033 = vrot.slane %v842, %v1032
    %v1035 = vadd.f32 %v1033, %v1021
    %v1036 = vadd.f32 %v1033, %v1026
    %1037 = vmatprep.subr.mxu0 0.0
    %1038 = vmatpush1.xpose.msra.mxu0 %v671
    %1039 = vmatprep.subr.mxu0 0.0
    %1040 = vmatpush1.xpose.msra.mxu0 %v675
    %1041 = vmatprep.subr.mxu0 0.0
    %1042 = vmatpush1.xpose.msra.mxu0 0.0
    %1043 = vmatprep.subr.mxu0 0.0
    %1044 = vmatpush1.xpose.msra.mxu0 0.0
    %1045 = vmatprep.subr.mxu0 0.0
    %1046 = vmatpush1.xpose.msra.mxu0 0.0
    %1047 = vmatprep.subr.mxu0 0.0
    %1048 = vmatpush1.xpose.msra.mxu0 0.0
    %1049 = vmatprep.subr.mxu0 0.0
    %1050 = vmatpush1.xpose.msra.mxu0 0.0
    %1051 = vmatprep.subr.mxu0 0.0
    %1052 = vmatpush1.xpose.msra.mxu0 0.0
    %1053 = vmatprep.subr.mxu0 0.0
    %1054 = vmatpush1.xpose.msra.mxu0 0.0
    %1055 = vmatprep.subr.mxu0 0.0
    %1056 = vmatpush1.xpose.msra.mxu0 0.0
    %1057 = vmatprep.subr.mxu0 0.0
    %1058 = vmatpush1.xpose.msra.mxu0 0.0
    %1059 = vmatprep.subr.mxu0 0.0
    %1060 = vmatpush1.xpose.msra.mxu0 0.0
    %1061 = vmatprep.subr.mxu0 0.0
    %1062 = vmatpush1.xpose.msra.mxu0 0.0
    %1063 = vmatprep.subr.mxu0 0.0
    %1064 = vmatpush1.xpose.msra.mxu0 0.0
    %1065 = vmatprep.subr.mxu0 0.0
    %1066 = vmatpush1.xpose.msra.mxu0 0.0
    %1067 = vmatprep.subr.mxu0 0.0
    %1068 = vmatpush1.xpose.msra.mxu0 0.0
    %1069 = vmatprep.subr.mxu0 0.0
    %1070 = vmatpush1.xpose.msra.mxu0 0.0
    %1071 = vmatprep.subr.mxu0 0.0
    %1072 = vmatpush1.xpose.msra.mxu0 0.0
    %1073 = vmatprep.subr.mxu0 0.0
    %1074 = vmatpush1.xpose.msra.mxu0 0.0
    %1075 = vmatprep.subr.mxu0 0.0
    %1076 = vmatpush1.xpose.msra.mxu0 0.0
    %1077 = vmatprep.subr.mxu0 0.0
    %1078 = vmatpush1.xpose.msra.mxu0 0.0
    %1079 = vmatprep.subr.mxu0 0.0
    %1080 = vmatpush1.xpose.msra.mxu0 0.0
    %1081 = vmatprep.subr.mxu0 0.0
    %1082 = vmatpush1.xpose.msra.mxu0 0.0
    %1083 = vmatprep.subr.mxu0 0.0
    %1084 = vmatpush1.xpose.msra.mxu0 0.0
    %1085 = vmatprep.subr.mxu0 0.0
    %1086 = vmatpush1.xpose.msra.mxu0 0.0
    %1087 = vmatprep.subr.mxu0 0.0
    %1088 = vmatpush1.xpose.msra.mxu0 0.0
    %1089 = vmatprep.subr.mxu0 0.0
    %1090 = vmatpush1.xpose.msra.mxu0 0.0
    %1091 = vmatprep.subr.mxu0 0.0
    %1092 = vmatpush1.xpose.msra.mxu0 0.0
    %1093 = vmatprep.subr.mxu0 0.0
    %1094 = vmatpush1.xpose.msra.mxu0 0.0
    %1095 = vmatprep.subr.mxu0 0.0
    %1096 = vmatpush1.xpose.msra.mxu0 0.0
    %1097 = vmatprep.subr.mxu0 0.0
    %1098 = vmatpush1.xpose.msra.mxu0 0.0
    %1099 = vmatprep.subr.mxu0 0.0
    %1100 = vmatpush1.xpose.msra.mxu0 0.0
    %1101 = vmatprep.mubr.f32.mxu0 0.0
    %1102 = vmatmul.mubr.f32.gmra.mrb[0].mxu0 %v722
    %v1103 = vpop.f32.mrb[0].mxu0
    %v1104 = vadd.f32 0.0, %v1103
    %v1105 = vpop.f32.mrb[0].mxu0
    %1106 = vmatprep.mubr.f32.mxu0 0.0
    %1107 = vmatmul.mubr.f32.gmra.mrb[0].mxu0 %v726
    %v1108 = vpop.f32.mrb[0].mxu0
    %v1109 = vadd.f32 0.0, %v1108
    %v1110 = vpop.f32.mrb[0].mxu0
    %1111 = vdwg.mxu0
    %v1112 = vsel %vm918, %v1104, -inf
    %1113 = vmax.xlane.f32.xlu0 %v1112
    %v1114 = vpop.xlane.xlu0 %1113
    %v1115 = vsel %vm918, %v1109, -inf
    %1116 = vmax.xlane.f32.xlu0 %v1115
    %v1117 = vpop.xlane.xlu0 %1116
    %v1118 = vsub.f32 %v1104, %v1114
    %v1119 = vsub.f32 %v1109, %v1117
    %v1120 = vmul.f32 %v1118, 1.442695
    %v1121 = vpow.pop %v1120
    %v1122 = vmul.f32 %v1119, 1.442695
    %v1123 = vpow.pop %v1122
    %v1124 = vsel %vm918, %v1121, 0.0
    %1125 = vadd.xlane.f32.xlu0 %v1124
    %v1126 = vpop.xlane.xlu0 %1125
    %v1127 = vsel %vm918, %v1123, 0.0
    %1128 = vadd.xlane.f32.xlu0 %v1127
    %v1129 = vpop.xlane.xlu0 %1128
    %v1130 = vrcp.pop %v1126
    %v1131 = vrcp.pop %v1129
    %v1132 = vmul.f32 %v1121, %v1130
    %v1133 = vmul.f32 %v1123, %v1131
    %s1134 = scalar_lea.vmem [#allocation8], 16
    %v1135 = vld [vmem:[%s1134] sm:$0xff]
    %v1136 = vld [vmem:[%s1134 + $0x8] sm:$0xff]
    %v1137 = vmul.f32 %v1132, %v943
    %v1138 = vmul.f32 %v1133, %v943
    %v1139 = vadd.f32 %v1135, %v1137
    %v1140 = vadd.f32 %v1136, %v1138
    %v1142 = vsel %vm918, %v1139, 0
    %v1145 = vsel %vm918, %v1140, 0
    %1147 = vmatprep.subr.mxu0 0.0
    %1148 = vmatpush1.msra.mxu0 %v724
    %1149 = vmatprep.subr.mxu0 0.0
    %1150 = vmatpush1.msra.mxu0 %v728
    %1151 = vmatprep.subr.mxu0 0.0
    %1152 = vmatpush1.msra.mxu0 0.0
    %1153 = vmatprep.subr.mxu0 0.0
    %1154 = vmatpush1.msra.mxu0 0.0
    %1155 = vmatprep.subr.mxu0 0.0
    %1156 = vmatpush1.msra.mxu0 0.0
    %1157 = vmatprep.subr.mxu0 0.0
    %1158 = vmatpush1.msra.mxu0 0.0
    %1159 = vmatprep.subr.mxu0 0.0
    %1160 = vmatpush1.msra.mxu0 0.0
    %1161 = vmatprep.subr.mxu0 0.0
    %1162 = vmatpush1.msra.mxu0 0.0
    %1163 = vmatprep.subr.mxu0 0.0
    %1164 = vmatpush1.msra.mxu0 0.0
    %1165 = vmatprep.subr.mxu0 0.0
    %1166 = vmatpush1.msra.mxu0 0.0
    %1167 = vmatprep.subr.mxu0 0.0
    %1168 = vmatpush1.msra.mxu0 0.0
    %1169 = vmatprep.subr.mxu0 0.0
    %1170 = vmatpush1.msra.mxu0 0.0
    %1171 = vmatprep.subr.mxu0 0.0
    %1172 = vmatpush1.msra.mxu0 0.0
    %1173 = vmatprep.subr.mxu0 0.0
    %1174 = vmatpush1.msra.mxu0 0.0
    %1175 = vmatprep.subr.mxu0 0.0
    %1176 = vmatpush1.msra.mxu0 0.0
    %1177 = vmatprep.subr.mxu0 0.0
    %1178 = vmatpush1.msra.mxu0 0.0
    %1179 = vmatprep.subr.mxu0 0.0
    %1180 = vmatpush1.msra.mxu0 0.0
    %1181 = vmatprep.subr.mxu0 0.0
    %1182 = vmatpush1.msra.mxu0 0.0
    %1183 = vmatprep.subr.mxu0 0.0
    %1184 = vmatpush1.msra.mxu0 0.0
    %1185 = vmatprep.subr.mxu0 0.0
    %1186 = vmatpush1.msra.mxu0 0.0
    %1187 = vmatprep.subr.mxu0 0.0
    %1188 = vmatpush1.msra.mxu0 0.0
    %1189 = vmatprep.subr.mxu0 0.0
    %1190 = vmatpush1.msra.mxu0 0.0
    %1191 = vmatprep.subr.mxu0 0.0
    %1192 = vmatpush1.msra.mxu0 0.0
    %1193 = vmatprep.subr.mxu0 0.0
    %1194 = vmatpush1.msra.mxu0 0.0
    %1195 = vmatprep.subr.mxu0 0.0
    %1196 = vmatpush1.msra.mxu0 0.0
    %1197 = vmatprep.subr.mxu0 0.0
    %1198 = vmatpush1.msra.mxu0 0.0
    %1199 = vmatprep.subr.mxu0 0.0
    %1200 = vmatpush1.msra.mxu0 0.0
    %1201 = vmatprep.subr.mxu0 0.0
    %1202 = vmatpush1.msra.mxu0 0.0
    %1203 = vmatprep.subr.mxu0 0.0
    %1204 = vmatpush1.msra.mxu0 0.0
    %1205 = vmatprep.subr.mxu0 0.0
    %1206 = vmatpush1.msra.mxu0 0.0
    %1207 = vmatprep.subr.mxu0 0.0
    %1208 = vmatpush1.msra.mxu0 0.0
    %1209 = vmatprep.subr.mxu0 0.0
    %1210 = vmatpush1.msra.mxu0 0.0
    %1211 = vmatprep.mubr.f32.mxu0 0.0
    %1212 = vmatmul.mubr.f32.gmra.mrb[0].mxu0 %v1142
    %v1213 = vpop.f32.mrb[0].mxu0
    %v1214 = vadd.f32 0.0, %v1213
    %v1215 = vpop.f32.mrb[0].mxu0
    %1216 = vmatprep.mubr.f32.mxu0 0.0
    %1217 = vmatmul.mubr.f32.gmra.mrb[0].mxu0 %v1145
    %v1218 = vpop.f32.mrb[0].mxu0
    %v1219 = vadd.f32 0.0, %v1218
    %v1220 = vpop.f32.mrb[0].mxu0
    %1221 = vdwg.mxu0
    %v1222 = vadd.f32 %v1035, %v1214
    %v1223 = vadd.f32 %v1036, %v1219
    %1224 = vmatprep.subr.mxu0 0.0
    %1225 = vmatpush1.xpose.msra.mxu0 %v775
    %1226 = vmatprep.subr.mxu0 0.0
    %1227 = vmatpush1.xpose.msra.mxu0 %v779
    %1228 = vmatprep.subr.mxu0 0.0
    %1229 = vmatpush1.xpose.msra.mxu0 0.0
    %1230 = vmatprep.subr.mxu0 0.0
    %1231 = vmatpush1.xpose.msra.mxu0 0.0
    %1232 = vmatprep.subr.mxu0 0.0
    %1233 = vmatpush1.xpose.msra.mxu0 0.0
    %1234 = vmatprep.subr.mxu0 0.0
    %1235 = vmatpush1.xpose.msra.mxu0 0.0
    %1236 = vmatprep.subr.mxu0 0.0
    %1237 = vmatpush1.xpose.msra.mxu0 0.0
    %1238 = vmatprep.subr.mxu0 0.0
    %1239 = vmatpush1.xpose.msra.mxu0 0.0
    %1240 = vmatprep.subr.mxu0 0.0
    %1241 = vmatpush1.xpose.msra.mxu0 0.0
    %1242 = vmatprep.subr.mxu0 0.0
    %1243 = vmatpush1.xpose.msra.mxu0 0.0
    %1244 = vmatprep.subr.mxu0 0.0
    %1245 = vmatpush1.xpose.msra.mxu0 0.0
    %1246 = vmatprep.subr.mxu0 0.0
    %1247 = vmatpush1.xpose.msra.mxu0 0.0
    %1248 = vmatprep.subr.mxu0 0.0
    %1249 = vmatpush1.xpose.msra.mxu0 0.0
    %1250 = vmatprep.subr.mxu0 0.0
    %1251 = vmatpush1.xpose.msra.mxu0 0.0
    %1252 = vmatprep.subr.mxu0 0.0
    %1253 = vmatpush1.xpose.msra.mxu0 0.0
    %1254 = vmatprep.subr.mxu0 0.0
    %1255 = vmatpush1.xpose.msra.mxu0 0.0
    %1256 = vmatprep.subr.mxu0 0.0
    %1257 = vmatpush1.xpose.msra.mxu0 0.0
    %1258 = vmatprep.subr.mxu0 0.0
    %1259 = vmatpush1.xpose.msra.mxu0 0.0
    %1260 = vmatprep.subr.mxu0 0.0
    %1261 = vmatpush1.xpose.msra.mxu0 0.0
    %1262 = vmatprep.subr.mxu0 0.0
    %1263 = vmatpush1.xpose.msra.mxu0 0.0
    %1264 = vmatprep.subr.mxu0 0.0
    %1265 = vmatpush1.xpose.msra.mxu0 0.0
    %1266 = vmatprep.subr.mxu0 0.0
    %1267 = vmatpush1.xpose.msra.mxu0 0.0
    %1268 = vmatprep.subr.mxu0 0.0
    %1269 = vmatpush1.xpose.msra.mxu0 0.0
    %1270 = vmatprep.subr.mxu0 0.0
    %1271 = vmatpush1.xpose.msra.mxu0 0.0
    %1272 = vmatprep.subr.mxu0 0.0
    %1273 = vmatpush1.xpose.msra.mxu0 0.0
    %1274 = vmatprep.subr.mxu0 0.0
    %1275 = vmatpush1.xpose.msra.mxu0 0.0
    %1276 = vmatprep.subr.mxu0 0.0
    %1277 = vmatpush1.xpose.msra.mxu0 0.0
    %1278 = vmatprep.subr.mxu0 0.0
    %1279 = vmatpush1.xpose.msra.mxu0 0.0
    %1280 = vmatprep.subr.mxu0 0.0
    %1281 = vmatpush1.xpose.msra.mxu0 0.0
    %1282 = vmatprep.subr.mxu0 0.0
    %1283 = vmatpush1.xpose.msra.mxu0 0.0
    %1284 = vmatprep.subr.mxu0 0.0
    %1285 = vmatpush1.xpose.msra.mxu0 0.0
    %1286 = vmatprep.subr.mxu0 0.0
    %1287 = vmatpush1.xpose.msra.mxu0 0.0
    %1288 = vmatprep.mubr.f32.mxu0 0.0
    %1289 = vmatmul.mubr.f32.gmra.mrb[0].mxu0 %v777
    %v1290 = vpop.f32.mrb[0].mxu0
    %v1291 = vadd.f32 0.0, %v1290
    %v1292 = vpop.f32.mrb[0].mxu0
    %1293 = vmatprep.mubr.f32.mxu0 0.0
    %1294 = vmatmul.mubr.f32.gmra.mrb[0].mxu0 %v781
    %v1295 = vpop.f32.mrb[0].mxu0
    %v1296 = vadd.f32 0.0, %v1295
    %v1297 = vpop.f32.mrb[0].mxu0
    %1298 = vdwg.mxu0
    %v1299 = vsel %vm918, %v1291, -inf
    %1300 = vmax.xlane.f32.xlu0 %v1299
    %v1301 = vpop.xlane.xlu0 %1300
    %v1302 = vsel %vm918, %v1296, -inf
    %1303 = vmax.xlane.f32.xlu0 %v1302
    %v1304 = vpop.xlane.xlu0 %1303
    %v1305 = vsub.f32 %v1291, %v1301
    %v1306 = vsub.f32 %v1296, %v1304
    %v1307 = vmul.f32 %v1305, 1.442695
    %v1308 = vpow.pop %v1307
    %v1309 = vmul.f32 %v1306, 1.442695
    %v1310 = vpow.pop %v1309
    %v1311 = vsel %vm918, %v1308, 0.0
    %1312 = vadd.xlane.f32.xlu0 %v1311
    %v1313 = vpop.xlane.xlu0 %1312
    %v1314 = vsel %vm918, %v1310, 0.0
    %1315 = vadd.xlane.f32.xlu0 %v1314
    %v1316 = vpop.xlane.xlu0 %1315
    %v1317 = vrcp.pop %v1313
    %v1318 = vrcp.pop %v1316
    %v1319 = vmul.f32 %v1308, %v1317
    %v1320 = vmul.f32 %v1310, %v1318
    %s1321 = scalar_lea.vmem [#allocation8], 32
    %v1322 = vld [vmem:[%s1321] sm:$0xff]
    %v1323 = vld [vmem:[%s1321 + $0x8] sm:$0xff]
    %v1324 = vmul.f32 %v1319, %v943
    %v1325 = vmul.f32 %v1320, %v943
    %v1326 = vadd.f32 %v1322, %v1324
    %v1327 = vadd.f32 %v1323, %v1325
    %v1329 = vsel %vm918, %v1326, 0
    %v1332 = vsel %vm918, %v1327, 0
    %1334 = vmatprep.subr.mxu0 0.0
    %1335 = vmatpush1.msra.mxu0 %v828
    %1336 = vmatprep.subr.mxu0 0.0
    %1337 = vmatpush1.msra.mxu0 %v831
    %1338 = vmatprep.subr.mxu0 0.0
    %1339 = vmatpush1.msra.mxu0 0.0
    %1340 = vmatprep.subr.mxu0 0.0
    %1341 = vmatpush1.msra.mxu0 0.0
    %1342 = vmatprep.subr.mxu0 0.0
    %1343 = vmatpush1.msra.mxu0 0.0
    %1344 = vmatprep.subr.mxu0 0.0
    %1345 = vmatpush1.msra.mxu0 0.0
    %1346 = vmatprep.subr.mxu0 0.0
    %1347 = vmatpush1.msra.mxu0 0.0
    %1348 = vmatprep.subr.mxu0 0.0
    %1349 = vmatpush1.msra.mxu0 0.0
    %1350 = vmatprep.subr.mxu0 0.0
    %1351 = vmatpush1.msra.mxu0 0.0
    %1352 = vmatprep.subr.mxu0 0.0
    %1353 = vmatpush1.msra.mxu0 0.0
    %1354 = vmatprep.subr.mxu0 0.0
    %1355 = vmatpush1.msra.mxu0 0.0
    %1356 = vmatprep.subr.mxu0 0.0
    %1357 = vmatpush1.msra.mxu0 0.0
    %1358 = vmatprep.subr.mxu0 0.0
    %1359 = vmatpush1.msra.mxu0 0.0
    %1360 = vmatprep.subr.mxu0 0.0
    %1361 = vmatpush1.msra.mxu0 0.0
    %1362 = vmatprep.subr.mxu0 0.0
    %1363 = vmatpush1.msra.mxu0 0.0
    %1364 = vmatprep.subr.mxu0 0.0
    %1365 = vmatpush1.msra.mxu0 0.0
    %1366 = vmatprep.subr.mxu0 0.0
    %1367 = vmatpush1.msra.mxu0 0.0
    %1368 = vmatprep.subr.mxu0 0.0
    %1369 = vmatpush1.msra.mxu0 0.0
    %1370 = vmatprep.subr.mxu0 0.0
    %1371 = vmatpush1.msra.mxu0 0.0
    %1372 = vmatprep.subr.mxu0 0.0
    %1373 = vmatpush1.msra.mxu0 0.0
    %1374 = vmatprep.subr.mxu0 0.0
    %1375 = vmatpush1.msra.mxu0 0.0
    %1376 = vmatprep.subr.mxu0 0.0
    %1377 = vmatpush1.msra.mxu0 0.0
    %1378 = vmatprep.subr.mxu0 0.0
    %1379 = vmatpush1.msra.mxu0 0.0
    %1380 = vmatprep.subr.mxu0 0.0
    %1381 = vmatpush1.msra.mxu0 0.0
    %1382 = vmatprep.subr.mxu0 0.0
    %1383 = vmatpush1.msra.mxu0 0.0
    %1384 = vmatprep.subr.mxu0 0.0
    %1385 = vmatpush1.msra.mxu0 0.0
    %1386 = vmatprep.subr.mxu0 0.0
    %1387 = vmatpush1.msra.mxu0 0.0
    %1388 = vmatprep.subr.mxu0 0.0
    %1389 = vmatpush1.msra.mxu0 0.0
    %1390 = vmatprep.subr.mxu0 0.0
    %1391 = vmatpush1.msra.mxu0 0.0
    %1392 = vmatprep.subr.mxu0 0.0
    %1393 = vmatpush1.msra.mxu0 0.0
    %1394 = vmatprep.subr.mxu0 0.0
    %1395 = vmatpush1.msra.mxu0 0.0
    %1396 = vmatprep.subr.mxu0 0.0
    %1397 = vmatpush1.msra.mxu0 0.0
    %1398 = vmatprep.mubr.f32.mxu0 0.0
    %1399 = vmatmul.mubr.f32.gmra.mrb[0].mxu0 %v1329
    %v1400 = vpop.f32.mrb[0].mxu0
    %v1401 = vadd.f32 0.0, %v1400
    %v1402 = vpop.f32.mrb[0].mxu0
    %1403 = vmatprep.mubr.f32.mxu0 0.0
    %1404 = vmatmul.mubr.f32.gmra.mrb[0].mxu0 %v1332
    %v1405 = vpop.f32.mrb[0].mxu0
    %v1406 = vadd.f32 0.0, %v1405
    %v1407 = vpop.f32.mrb[0].mxu0
    %1408 = vdwg.mxu0
    %v1409 = vadd.f32 %v1222, %v1401
    %v1410 = vadd.f32 %v1223, %v1406
    %1411 = vst [vmem:[#allocation9] sm:$0xff] %v1409
    %1412 = vst [vmem:[#allocation9 + $0x8] sm:$0xff] %v1410
    %v1413 = vld [vmem:[%s3] sm:$0x1]
    %1414 = vmatprep.subr.mxu0 0.0
    %1415 = vmatpush1.xpose.msra.mxu0 %v626
    %1416 = vmatprep.subr.mxu0 0.0
    %1417 = vmatpush1.xpose.msra.mxu0 %v630
    %1418 = vmatprep.subr.mxu0 0.0
    %1419 = vmatpush1.xpose.msra.mxu0 0.0
    %1420 = vmatprep.subr.mxu0 0.0
    %1421 = vmatpush1.xpose.msra.mxu0 0.0
    %1422 = vmatprep.subr.mxu0 0.0
    %1423 = vmatpush1.xpose.msra.mxu0 0.0
    %1424 = vmatprep.subr.mxu0 0.0
    %1425 = vmatpush1.xpose.msra.mxu0 0.0
    %1426 = vmatprep.subr.mxu0 0.0
    %1427 = vmatpush1.xpose.msra.mxu0 0.0
    %1428 = vmatprep.subr.mxu0 0.0
    %1429 = vmatpush1.xpose.msra.mxu0 0.0
    %1430 = vmatprep.subr.mxu0 0.0
    %1431 = vmatpush1.xpose.msra.mxu0 0.0
    %1432 = vmatprep.subr.mxu0 0.0
    %1433 = vmatpush1.xpose.msra.mxu0 0.0
    %1434 = vmatprep.subr.mxu0 0.0
    %1435 = vmatpush1.xpose.msra.mxu0 0.0
    %1436 = vmatprep.subr.mxu0 0.0
    %1437 = vmatpush1.xpose.msra.mxu0 0.0
    %1438 = vmatprep.subr.mxu0 0.0
    %1439 = vmatpush1.xpose.msra.mxu0 0.0
    %1440 = vmatprep.subr.mxu0 0.0
    %1441 = vmatpush1.xpose.msra.mxu0 0.0
    %1442 = vmatprep.subr.mxu0 0.0
    %1443 = vmatpush1.xpose.msra.mxu0 0.0
    %1444 = vmatprep.subr.mxu0 0.0
    %1445 = vmatpush1.xpose.msra.mxu0 0.0
    %1446 = vmatprep.subr.mxu0 0.0
    %1447 = vmatpush1.xpose.msra.mxu0 0.0
    %1448 = vmatprep.subr.mxu0 0.0
    %1449 = vmatpush1.xpose.msra.mxu0 0.0
    %1450 = vmatprep.subr.mxu0 0.0
    %1451 = vmatpush1.xpose.msra.mxu0 0.0
    %1452 = vmatprep.subr.mxu0 0.0
    %1453 = vmatpush1.xpose.msra.mxu0 0.0
    %1454 = vmatprep.subr.mxu0 0.0
    %1455 = vmatpush1.xpose.msra.mxu0 0.0
    %1456 = vmatprep.subr.mxu0 0.0
    %1457 = vmatpush1.xpose.msra.mxu0 0.0
    %1458 = vmatprep.subr.mxu0 0.0
    %1459 = vmatpush1.xpose.msra.mxu0 0.0
    %1460 = vmatprep.subr.mxu0 0.0
    %1461 = vmatpush1.xpose.msra.mxu0 0.0
    %1462 = vmatprep.subr.mxu0 0.0
    %1463 = vmatpush1.xpose.msra.mxu0 0.0
    %1464 = vmatprep.subr.mxu0 0.0
    %1465 = vmatpush1.xpose.msra.mxu0 0.0
    %1466 = vmatprep.subr.mxu0 0.0
    %1467 = vmatpush1.xpose.msra.mxu0 0.0
    %1468 = vmatprep.subr.mxu0 0.0
    %1469 = vmatpush1.xpose.msra.mxu0 0.0
    %1470 = vmatprep.subr.mxu0 0.0
    %1471 = vmatpush1.xpose.msra.mxu0 0.0
    %1472 = vmatprep.subr.mxu0 0.0
    %1473 = vmatpush1.xpose.msra.mxu0 0.0
    %1474 = vmatprep.subr.mxu0 0.0
    %1475 = vmatpush1.xpose.msra.mxu0 0.0
    %1476 = vmatprep.subr.mxu0 0.0
    %1477 = vmatpush1.xpose.msra.mxu0 0.0
    %1478 = vmatprep.mubr.f32.mxu0 0.0
    %1479 = vmatmul.mubr.f32.gmra.mrb[0].mxu0 %v628
    %v1480 = vpop.f32.mrb[0].mxu0
    %v1481 = vadd.f32 0.0, %v1480
    %v1482 = vpop.f32.mrb[0].mxu0
    %1483 = vmatprep.mubr.f32.mxu0 0.0
    %1484 = vmatmul.mubr.f32.gmra.mrb[0].mxu0 %v632
    %v1485 = vpop.f32.mrb[0].mxu0
    %v1486 = vadd.f32 0.0, %v1485
    %v1487 = vpop.f32.mrb[0].mxu0
    %1488 = vdwg.mxu0
    %v1489 = vsel %vm918, %v1481, -inf
    %1490 = vmax.xlane.f32.xlu0 %v1489
    %v1491 = vpop.xlane.xlu0 %1490
    %v1492 = vsel %vm918, %v1486, -inf
    %1493 = vmax.xlane.f32.xlu0 %v1492
    %v1494 = vpop.xlane.xlu0 %1493
    %v1495 = vsub.f32 %v1481, %v1491
    %v1496 = vsub.f32 %v1486, %v1494
    %v1497 = vmul.f32 %v1495, 1.442695
    %v1498 = vpow.pop %v1497
    %v1499 = vmul.f32 %v1496, 1.442695
    %v1500 = vpow.pop %v1499
    %v1501 = vsel %vm918, %v1498, 0.0
    %1502 = vadd.xlane.f32.xlu0 %v1501
    %v1503 = vpop.xlane.xlu0 %1502
    %v1504 = vsel %vm918, %v1500, 0.0
    %1505 = vadd.xlane.f32.xlu0 %v1504
    %v1506 = vpop.xlane.xlu0 %1505
    %v1507 = vrcp.pop %v1503
    %v1508 = vrcp.pop %v1506
    %v1509 = vmul.f32 %v1498, %v1507
    %v1510 = vmul.f32 %v1500, %v1508
    %v1511 = vld [vmem:[#allocation8] sm:$0xff]
    %v1512 = vld [vmem:[#allocation8 + $0x8] sm:$0xff]
    %v1513 = vmul.f32 %v1509, %v943
    %v1514 = vmul.f32 %v1510, %v943
    %v1515 = vadd.f32 %v1511, %v1513
    %v1516 = vadd.f32 %v1512, %v1514
    %v1518 = vsel %vm918, %v1515, 0
    %v1521 = vsel %vm918, %v1516, 0
    %1523 = vmatprep.subr.mxu0 0.0
    %1524 = vmatpush1.msra.mxu0 %v679
    %1525 = vmatprep.subr.mxu0 0.0
    %1526 = vmatpush1.msra.mxu0 %v683
    %1527 = vmatprep.subr.mxu0 0.0
    %1528 = vmatpush1.msra.mxu0 0.0
    %1529 = vmatprep.subr.mxu0 0.0
    %1530 = vmatpush1.msra.mxu0 0.0
    %1531 = vmatprep.subr.mxu0 0.0
    %1532 = vmatpush1.msra.mxu0 0.0
    %1533 = vmatprep.subr.mxu0 0.0
    %1534 = vmatpush1.msra.mxu0 0.0
    %1535 = vmatprep.subr.mxu0 0.0
    %1536 = vmatpush1.msra.mxu0 0.0
    %1537 = vmatprep.subr.mxu0 0.0
    %1538 = vmatpush1.msra.mxu0 0.0
    %1539 = vmatprep.subr.mxu0 0.0
    %1540 = vmatpush1.msra.mxu0 0.0
    %1541 = vmatprep.subr.mxu0 0.0
    %1542 = vmatpush1.msra.mxu0 0.0
    %1543 = vmatprep.subr.mxu0 0.0
    %1544 = vmatpush1.msra.mxu0 0.0
    %1545 = vmatprep.subr.mxu0 0.0
    %1546 = vmatpush1.msra.mxu0 0.0
    %1547 = vmatprep.subr.mxu0 0.0
    %1548 = vmatpush1.msra.mxu0 0.0
    %1549 = vmatprep.subr.mxu0 0.0
    %1550 = vmatpush1.msra.mxu0 0.0
    %1551 = vmatprep.subr.mxu0 0.0
    %1552 = vmatpush1.msra.mxu0 0.0
    %1553 = vmatprep.subr.mxu0 0.0
    %1554 = vmatpush1.msra.mxu0 0.0
    %1555 = vmatprep.subr.mxu0 0.0
    %1556 = vmatpush1.msra.mxu0 0.0
    %1557 = vmatprep.subr.mxu0 0.0
    %1558 = vmatpush1.msra.mxu0 0.0
    %1559 = vmatprep.subr.mxu0 0.0
    %1560 = vmatpush1.msra.mxu0 0.0
    %1561 = vmatprep.subr.mxu0 0.0
    %1562 = vmatpush1.msra.mxu0 0.0
    %1563 = vmatprep.subr.mxu0 0.0
    %1564 = vmatpush1.msra.mxu0 0.0
    %1565 = vmatprep.subr.mxu0 0.0
    %1566 = vmatpush1.msra.mxu0 0.0
    %1567 = vmatprep.subr.mxu0 0.0
    %1568 = vmatpush1.msra.mxu0 0.0
    %1569 = vmatprep.subr.mxu0 0.0
    %1570 = vmatpush1.msra.mxu0 0.0
    %1571 = vmatprep.subr.mxu0 0.0
    %1572 = vmatpush1.msra.mxu0 0.0
    %1573 = vmatprep.subr.mxu0 0.0
    %1574 = vmatpush1.msra.mxu0 0.0
    %1575 = vmatprep.subr.mxu0 0.0
    %1576 = vmatpush1.msra.mxu0 0.0
    %1577 = vmatprep.subr.mxu0 0.0
    %1578 = vmatpush1.msra.mxu0 0.0
    %1579 = vmatprep.subr.mxu0 0.0
    %1580 = vmatpush1.msra.mxu0 0.0
    %1581 = vmatprep.subr.mxu0 0.0
    %1582 = vmatpush1.msra.mxu0 0.0
    %1583 = vmatprep.subr.mxu0 0.0
    %1584 = vmatpush1.msra.mxu0 0.0
    %1585 = vmatprep.subr.mxu0 0.0
    %1586 = vmatpush1.msra.mxu0 0.0
    %1587 = vmatprep.mubr.f32.mxu0 0.0
    %1588 = vmatmul.mubr.f32.gmra.mrb[0].mxu0 %v1518
    %v1589 = vpop.f32.mrb[0].mxu0
    %v1590 = vadd.f32 0.0, %v1589
    %v1591 = vpop.f32.mrb[0].mxu0
    %1592 = vmatprep.mubr.f32.mxu0 0.0
    %1593 = vmatmul.mubr.f32.gmra.mrb[0].mxu0 %v1521
    %v1594 = vpop.f32.mrb[0].mxu0
    %v1595 = vadd.f32 0.0, %v1594
    %v1596 = vpop.f32.mrb[0].mxu0
    %1597 = vdwg.mxu0
    %v1599 = vlaneseq
    %v1600 = vshrl.u32 %v1599, 7
    %v1601 = vsub.s32 0, %v1600
    %v1602 = vrot.slane %v1413, %v1601
    %v1604 = vadd.f32 %v1602, %v1590
    %v1605 = vadd.f32 %v1602, %v1595
    %1606 = vmatprep.subr.mxu0 0.0
    %1607 = vmatpush1.xpose.msra.mxu0 %v681
    %1608 = vmatprep.subr.mxu0 0.0
    %1609 = vmatpush1.xpose.msra.mxu0 %v685
    %1610 = vmatprep.subr.mxu0 0.0
    %1611 = vmatpush1.xpose.msra.mxu0 0.0
    %1612 = vmatprep.subr.mxu0 0.0
    %1613 = vmatpush1.xpose.msra.mxu0 0.0
    %1614 = vmatprep.subr.mxu0 0.0
    %1615 = vmatpush1.xpose.msra.mxu0 0.0
    %1616 = vmatprep.subr.mxu0 0.0
    %1617 = vmatpush1.xpose.msra.mxu0 0.0
    %1618 = vmatprep.subr.mxu0 0.0
    %1619 = vmatpush1.xpose.msra.mxu0 0.0
    %1620 = vmatprep.subr.mxu0 0.0
    %1621 = vmatpush1.xpose.msra.mxu0 0.0
    %1622 = vmatprep.subr.mxu0 0.0
    %1623 = vmatpush1.xpose.msra.mxu0 0.0
    %1624 = vmatprep.subr.mxu0 0.0
    %1625 = vmatpush1.xpose.msra.mxu0 0.0
    %1626 = vmatprep.subr.mxu0 0.0
    %1627 = vmatpush1.xpose.msra.mxu0 0.0
    %1628 = vmatprep.subr.mxu0 0.0
    %1629 = vmatpush1.xpose.msra.mxu0 0.0
    %1630 = vmatprep.subr.mxu0 0.0
    %1631 = vmatpush1.xpose.msra.mxu0 0.0
    %1632 = vmatprep.subr.mxu0 0.0
    %1633 = vmatpush1.xpose.msra.mxu0 0.0
    %1634 = vmatprep.subr.mxu0 0.0
    %1635 = vmatpush1.xpose.msra.mxu0 0.0
    %1636 = vmatprep.subr.mxu0 0.0
    %1637 = vmatpush1.xpose.msra.mxu0 0.0
    %1638 = vmatprep.subr.mxu0 0.0
    %1639 = vmatpush1.xpose.msra.mxu0 0.0
    %1640 = vmatprep.subr.mxu0 0.0
    %1641 = vmatpush1.xpose.msra.mxu0 0.0
    %1642 = vmatprep.subr.mxu0 0.0
    %1643 = vmatpush1.xpose.msra.mxu0 0.0
    %1644 = vmatprep.subr.mxu0 0.0
    %1645 = vmatpush1.xpose.msra.mxu0 0.0
    %1646 = vmatprep.subr.mxu0 0.0
    %1647 = vmatpush1.xpose.msra.mxu0 0.0
    %1648 = vmatprep.subr.mxu0 0.0
    %1649 = vmatpush1.xpose.msra.mxu0 0.0
    %1650 = vmatprep.subr.mxu0 0.0
    %1651 = vmatpush1.xpose.msra.mxu0 0.0
    %1652 = vmatprep.subr.mxu0 0.0
    %1653 = vmatpush1.xpose.msra.mxu0 0.0
    %1654 = vmatprep.subr.mxu0 0.0
    %1655 = vmatpush1.xpose.msra.mxu0 0.0
    %1656 = vmatprep.subr.mxu0 0.0
    %1657 = vmatpush1.xpose.msra.mxu0 0.0
    %1658 = vmatprep.subr.mxu0 0.0
    %1659 = vmatpush1.xpose.msra.mxu0 0.0
    %1660 = vmatprep.subr.mxu0 0.0
    %1661 = vmatpush1.xpose.msra.mxu0 0.0
    %1662 = vmatprep.subr.mxu0 0.0
    %1663 = vmatpush1.xpose.msra.mxu0 0.0
    %1664 = vmatprep.subr.mxu0 0.0
    %1665 = vmatpush1.xpose.msra.mxu0 0.0
    %1666 = vmatprep.subr.mxu0 0.0
    %1667 = vmatpush1.xpose.msra.mxu0 0.0
    %1668 = vmatprep.subr.mxu0 0.0
    %1669 = vmatpush1.xpose.msra.mxu0 0.0
    %1670 = vmatprep.mubr.f32.mxu0 0.0
    %1671 = vmatmul.mubr.f32.gmra.mrb[0].mxu0 %v732
    %v1672 = vpop.f32.mrb[0].mxu0
    %v1673 = vadd.f32 0.0, %v1672
    %v1674 = vpop.f32.mrb[0].mxu0
    %1675 = vmatprep.mubr.f32.mxu0 0.0
    %1676 = vmatmul.mubr.f32.gmra.mrb[0].mxu0 %v736
    %v1677 = vpop.f32.mrb[0].mxu0
    %v1678 = vadd.f32 0.0, %v1677
    %v1679 = vpop.f32.mrb[0].mxu0
    %1680 = vdwg.mxu0
    %v1681 = vsel %vm918, %v1673, -inf
    %1682 = vmax.xlane.f32.xlu0 %v1681
    %v1683 = vpop.xlane.xlu0 %1682
    %v1684 = vsel %vm918, %v1678, -inf
    %1685 = vmax.xlane.f32.xlu0 %v1684
    %v1686 = vpop.xlane.xlu0 %1685
    %v1687 = vsub.f32 %v1673, %v1683
    %v1688 = vsub.f32 %v1678, %v1686
    %v1689 = vmul.f32 %v1687, 1.442695
    %v1690 = vpow.pop %v1689
    %v1691 = vmul.f32 %v1688, 1.442695
    %v1692 = vpow.pop %v1691
    %v1693 = vsel %vm918, %v1690, 0.0
    %1694 = vadd.xlane.f32.xlu0 %v1693
    %v1695 = vpop.xlane.xlu0 %1694
    %v1696 = vsel %vm918, %v1692, 0.0
    %1697 = vadd.xlane.f32.xlu0 %v1696
    %v1698 = vpop.xlane.xlu0 %1697
    %v1699 = vrcp.pop %v1695
    %v1700 = vrcp.pop %v1698
    %v1701 = vmul.f32 %v1690, %v1699
    %v1702 = vmul.f32 %v1692, %v1700
    %v1703 = vld [vmem:[%s1134] sm:$0xff]
    %v1704 = vld [vmem:[%s1134 + $0x8] sm:$0xff]
    %v1705 = vmul.f32 %v1701, %v943
    %v1706 = vmul.f32 %v1702, %v943
    %v1707 = vadd.f32 %v1703, %v1705
    %v1708 = vadd.f32 %v1704, %v1706
    %v1710 = vsel %vm918, %v1707, 0
    %v1713 = vsel %vm918, %v1708, 0
    %1715 = vmatprep.subr.mxu0 0.0
    %1716 = vmatpush1.msra.mxu0 %v734
    %1717 = vmatprep.subr.mxu0 0.0
    %1718 = vmatpush1.msra.mxu0 %v738
    %1719 = vmatprep.subr.mxu0 0.0
    %1720 = vmatpush1.msra.mxu0 0.0
    %1721 = vmatprep.subr.mxu0 0.0
    %1722 = vmatpush1.msra.mxu0 0.0
    %1723 = vmatprep.subr.mxu0 0.0
    %1724 = vmatpush1.msra.mxu0 0.0
    %1725 = vmatprep.subr.mxu0 0.0
    %1726 = vmatpush1.msra.mxu0 0.0
    %1727 = vmatprep.subr.mxu0 0.0
    %1728 = vmatpush1.msra.mxu0 0.0
    %1729 = vmatprep.subr.mxu0 0.0
    %1730 = vmatpush1.msra.mxu0 0.0
    %1731 = vmatprep.subr.mxu0 0.0
    %1732 = vmatpush1.msra.mxu0 0.0
    %1733 = vmatprep.subr.mxu0 0.0
    %1734 = vmatpush1.msra.mxu0 0.0
    %1735 = vmatprep.subr.mxu0 0.0
    %1736 = vmatpush1.msra.mxu0 0.0
    %1737 = vmatprep.subr.mxu0 0.0
    %1738 = vmatpush1.msra.mxu0 0.0
    %1739 = vmatprep.subr.mxu0 0.0
    %1740 = vmatpush1.msra.mxu0 0.0
    %1741 = vmatprep.subr.mxu0 0.0
    %1742 = vmatpush1.msra.mxu0 0.0
    %1743 = vmatprep.subr.mxu0 0.0
    %1744 = vmatpush1.msra.mxu0 0.0
    %1745 = vmatprep.subr.mxu0 0.0
    %1746 = vmatpush1.msra.mxu0 0.0
    %1747 = vmatprep.subr.mxu0 0.0
    %1748 = vmatpush1.msra.mxu0 0.0
    %1749 = vmatprep.subr.mxu0 0.0
    %1750 = vmatpush1.msra.mxu0 0.0
    %1751 = vmatprep.subr.mxu0 0.0
    %1752 = vmatpush1.msra.mxu0 0.0
    %1753 = vmatprep.subr.mxu0 0.0
    %1754 = vmatpush1.msra.mxu0 0.0
    %1755 = vmatprep.subr.mxu0 0.0
    %1756 = vmatpush1.msra.mxu0 0.0
    %1757 = vmatprep.subr.mxu0 0.0
    %1758 = vmatpush1.msra.mxu0 0.0
    %1759 = vmatprep.subr.mxu0 0.0
    %1760 = vmatpush1.msra.mxu0 0.0
    %1761 = vmatprep.subr.mxu0 0.0
    %1762 = vmatpush1.msra.mxu0 0.0
    %1763 = vmatprep.subr.mxu0 0.0
    %1764 = vmatpush1.msra.mxu0 0.0
    %1765 = vmatprep.subr.mxu0 0.0
    %1766 = vmatpush1.msra.mxu0 0.0
    %1767 = vmatprep.subr.mxu0 0.0
    %1768 = vmatpush1.msra.mxu0 0.0
    %1769 = vmatprep.subr.mxu0 0.0
    %1770 = vmatpush1.msra.mxu0 0.0
    %1771 = vmatprep.subr.mxu0 0.0
    %1772 = vmatpush1.msra.mxu0 0.0
    %1773 = vmatprep.subr.mxu0 0.0
    %1774 = vmatpush1.msra.mxu0 0.0
    %1775 = vmatprep.subr.mxu0 0.0
    %1776 = vmatpush1.msra.mxu0 0.0
    %1777 = vmatprep.subr.mxu0 0.0
    %1778 = vmatpush1.msra.mxu0 0.0
    %1779 = vmatprep.mubr.f32.mxu0 0.0
    %1780 = vmatmul.mubr.f32.gmra.mrb[0].mxu0 %v1710
    %v1781 = vpop.f32.mrb[0].mxu0
    %v1782 = vadd.f32 0.0, %v1781
    %v1783 = vpop.f32.mrb[0].mxu0
    %1784 = vmatprep.mubr.f32.mxu0 0.0
    %1785 = vmatmul.mubr.f32.gmra.mrb[0].mxu0 %v1713
    %v1786 = vpop.f32.mrb[0].mxu0
    %v1787 = vadd.f32 0.0, %v1786
    %v1788 = vpop.f32.mrb[0].mxu0
    %1789 = vdwg.mxu0
    %v1790 = vadd.f32 %v1604, %v1782
    %v1791 = vadd.f32 %v1605, %v1787
    %1792 = vmatprep.subr.mxu0 0.0
    %1793 = vmatpush1.xpose.msra.mxu0 %v785
    %1794 = vmatprep.subr.mxu0 0.0
    %1795 = vmatpush1.xpose.msra.mxu0 %v789
    %1796 = vmatprep.subr.mxu0 0.0
    %1797 = vmatpush1.xpose.msra.mxu0 0.0
    %1798 = vmatprep.subr.mxu0 0.0
    %1799 = vmatpush1.xpose.msra.mxu0 0.0
    %1800 = vmatprep.subr.mxu0 0.0
    %1801 = vmatpush1.xpose.msra.mxu0 0.0
    %1802 = vmatprep.subr.mxu0 0.0
    %1803 = vmatpush1.xpose.msra.mxu0 0.0
    %1804 = vmatprep.subr.mxu0 0.0
    %1805 = vmatpush1.xpose.msra.mxu0 0.0
    %1806 = vmatprep.subr.mxu0 0.0
    %1807 = vmatpush1.xpose.msra.mxu0 0.0
    %1808 = vmatprep.subr.mxu0 0.0
    %1809 = vmatpush1.xpose.msra.mxu0 0.0
    %1810 = vmatprep.subr.mxu0 0.0
    %1811 = vmatpush1.xpose.msra.mxu0 0.0
    %1812 = vmatprep.subr.mxu0 0.0
    %1813 = vmatpush1.xpose.msra.mxu0 0.0
    %1814 = vmatprep.subr.mxu0 0.0
    %1815 = vmatpush1.xpose.msra.mxu0 0.0
    %1816 = vmatprep.subr.mxu0 0.0
    %1817 = vmatpush1.xpose.msra.mxu0 0.0
    %1818 = vmatprep.subr.mxu0 0.0
    %1819 = vmatpush1.xpose.msra.mxu0 0.0
    %1820 = vmatprep.subr.mxu0 0.0
    %1821 = vmatpush1.xpose.msra.mxu0 0.0
    %1822 = vmatprep.subr.mxu0 0.0
    %1823 = vmatpush1.xpose.msra.mxu0 0.0
    %1824 = vmatprep.subr.mxu0 0.0
    %1825 = vmatpush1.xpose.msra.mxu0 0.0
    %1826 = vmatprep.subr.mxu0 0.0
    %1827 = vmatpush1.xpose.msra.mxu0 0.0
    %1828 = vmatprep.subr.mxu0 0.0
    %1829 = vmatpush1.xpose.msra.mxu0 0.0
    %1830 = vmatprep.subr.mxu0 0.0
    %1831 = vmatpush1.xpose.msra.mxu0 0.0
    %1832 = vmatprep.subr.mxu0 0.0
    %1833 = vmatpush1.xpose.msra.mxu0 0.0
    %1834 = vmatprep.subr.mxu0 0.0
    %1835 = vmatpush1.xpose.msra.mxu0 0.0
    %1836 = vmatprep.subr.mxu0 0.0
    %1837 = vmatpush1.xpose.msra.mxu0 0.0
    %1838 = vmatprep.subr.mxu0 0.0
    %1839 = vmatpush1.xpose.msra.mxu0 0.0
    %1840 = vmatprep.subr.mxu0 0.0
    %1841 = vmatpush1.xpose.msra.mxu0 0.0
    %1842 = vmatprep.subr.mxu0 0.0
    %1843 = vmatpush1.xpose.msra.mxu0 0.0
    %1844 = vmatprep.subr.mxu0 0.0
    %1845 = vmatpush1.xpose.msra.mxu0 0.0
    %1846 = vmatprep.subr.mxu0 0.0
    %1847 = vmatpush1.xpose.msra.mxu0 0.0
    %1848 = vmatprep.subr.mxu0 0.0
    %1849 = vmatpush1.xpose.msra.mxu0 0.0
    %1850 = vmatprep.subr.mxu0 0.0
    %1851 = vmatpush1.xpose.msra.mxu0 0.0
    %1852 = vmatprep.subr.mxu0 0.0
    %1853 = vmatpush1.xpose.msra.mxu0 0.0
    %1854 = vmatprep.subr.mxu0 0.0
    %1855 = vmatpush1.xpose.msra.mxu0 0.0
    %1856 = vmatprep.mubr.f32.mxu0 0.0
    %1857 = vmatmul.mubr.f32.gmra.mrb[0].mxu0 %v787
    %v1858 = vpop.f32.mrb[0].mxu0
    %v1859 = vadd.f32 0.0, %v1858
    %v1860 = vpop.f32.mrb[0].mxu0
    %1861 = vmatprep.mubr.f32.mxu0 0.0
    %1862 = vmatmul.mubr.f32.gmra.mrb[0].mxu0 %v791
    %v1863 = vpop.f32.mrb[0].mxu0
    %v1864 = vadd.f32 0.0, %v1863
    %v1865 = vpop.f32.mrb[0].mxu0
    %1866 = vdwg.mxu0
    %v1867 = vsel %vm918, %v1859, -inf
    %1868 = vmax.xlane.f32.xlu0 %v1867
    %v1869 = vpop.xlane.xlu0 %1868
    %v1870 = vsel %vm918, %v1864, -inf
    %1871 = vmax.xlane.f32.xlu0 %v1870
    %v1872 = vpop.xlane.xlu0 %1871
    %v1873 = vsub.f32 %v1859, %v1869
    %v1874 = vsub.f32 %v1864, %v1872
    %v1875 = vmul.f32 %v1873, 1.442695
    %v1876 = vpow.pop %v1875
    %v1877 = vmul.f32 %v1874, 1.442695
    %v1878 = vpow.pop %v1877
    %v1879 = vsel %vm918, %v1876, 0.0
    %1880 = vadd.xlane.f32.xlu0 %v1879
    %v1881 = vpop.xlane.xlu0 %1880
    %v1882 = vsel %vm918, %v1878, 0.0
    %1883 = vadd.xlane.f32.xlu0 %v1882
    %v1884 = vpop.xlane.xlu0 %1883
    %v1885 = vrcp.pop %v1881
    %v1886 = vrcp.pop %v1884
    %v1887 = vmul.f32 %v1876, %v1885
    %v1888 = vmul.f32 %v1878, %v1886
    %v1889 = vld [vmem:[%s1321] sm:$0xff]
    %v1890 = vld [vmem:[%s1321 + $0x8] sm:$0xff]
    %v1891 = vmul.f32 %v1887, %v943
    %v1892 = vmul.f32 %v1888, %v943
    %v1893 = vadd.f32 %v1889, %v1891
    %v1894 = vadd.f32 %v1890, %v1892
    %v1896 = vsel %vm918, %v1893, 0
    %v1899 = vsel %vm918, %v1894, 0
    %1901 = vmatprep.subr.mxu0 0.0
    %1902 = vmatpush1.msra.mxu0 %v836
    %1903 = vmatprep.subr.mxu0 0.0
    %1904 = vmatpush1.msra.mxu0 %v839
    %1905 = vmatprep.subr.mxu0 0.0
    %1906 = vmatpush1.msra.mxu0 0.0
    %1907 = vmatprep.subr.mxu0 0.0
    %1908 = vmatpush1.msra.mxu0 0.0
    %1909 = vmatprep.subr.mxu0 0.0
    %1910 = vmatpush1.msra.mxu0 0.0
    %1911 = vmatprep.subr.mxu0 0.0
    %1912 = vmatpush1.msra.mxu0 0.0
    %1913 = vmatprep.subr.mxu0 0.0
    %1914 = vmatpush1.msra.mxu0 0.0
    %1915 = vmatprep.subr.mxu0 0.0
    %1916 = vmatpush1.msra.mxu0 0.0
    %1917 = vmatprep.subr.mxu0 0.0
    %1918 = vmatpush1.msra.mxu0 0.0
    %1919 = vmatprep.subr.mxu0 0.0
    %1920 = vmatpush1.msra.mxu0 0.0
    %1921 = vmatprep.subr.mxu0 0.0
    %1922 = vmatpush1.msra.mxu0 0.0
    %1923 = vmatprep.subr.mxu0 0.0
    %1924 = vmatpush1.msra.mxu0 0.0
    %1925 = vmatprep.subr.mxu0 0.0
    %1926 = vmatpush1.msra.mxu0 0.0
    %1927 = vmatprep.subr.mxu0 0.0
    %1928 = vmatpush1.msra.mxu0 0.0
    %1929 = vmatprep.subr.mxu0 0.0
    %1930 = vmatpush1.msra.mxu0 0.0
    %1931 = vmatprep.subr.mxu0 0.0
    %1932 = vmatpush1.msra.mxu0 0.0
    %1933 = vmatprep.subr.mxu0 0.0
    %1934 = vmatpush1.msra.mxu0 0.0
    %1935 = vmatprep.subr.mxu0 0.0
    %1936 = vmatpush1.msra.mxu0 0.0
    %1937 = vmatprep.subr.mxu0 0.0
    %1938 = vmatpush1.msra.mxu0 0.0
    %1939 = vmatprep.subr.mxu0 0.0
    %1940 = vmatpush1.msra.mxu0 0.0
    %1941 = vmatprep.subr.mxu0 0.0
    %1942 = vmatpush1.msra.mxu0 0.0
    %1943 = vmatprep.subr.mxu0 0.0
    %1944 = vmatpush1.msra.mxu0 0.0
    %1945 = vmatprep.subr.mxu0 0.0
    %1946 = vmatpush1.msra.mxu0 0.0
    %1947 = vmatprep.subr.mxu0 0.0
    %1948 = vmatpush1.msra.mxu0 0.0
    %1949 = vmatprep.subr.mxu0 0.0
    %1950 = vmatpush1.msra.mxu0 0.0
    %1951 = vmatprep.subr.mxu0 0.0
    %1952 = vmatpush1.msra.mxu0 0.0
    %1953 = vmatprep.subr.mxu0 0.0
    %1954 = vmatpush1.msra.mxu0 0.0
    %1955 = vmatprep.subr.mxu0 0.0
    %1956 = vmatpush1.msra.mxu0 0.0
    %1957 = vmatprep.subr.mxu0 0.0
    %1958 = vmatpush1.msra.mxu0 0.0
    %1959 = vmatprep.subr.mxu0 0.0
    %1960 = vmatpush1.msra.mxu0 0.0
    %1961 = vmatprep.subr.mxu0 0.0
    %1962 = vmatpush1.msra.mxu0 0.0
    %1963 = vmatprep.subr.mxu0 0.0
    %1964 = vmatpush1.msra.mxu0 0.0
    %1965 = vmatprep.mubr.f32.mxu0 0.0
    %1966 = vmatmul.mubr.f32.gmra.mrb[0].mxu0 %v1896
    %v1967 = vpop.f32.mrb[0].mxu0
    %v1968 = vadd.f32 0.0, %v1967
    %v1969 = vpop.f32.mrb[0].mxu0
    %1970 = vmatprep.mubr.f32.mxu0 0.0
    %1971 = vmatmul.mubr.f32.gmra.mrb[0].mxu0 %v1899
    %v1972 = vpop.f32.mrb[0].mxu0
    %v1973 = vadd.f32 0.0, %v1972
    %v1974 = vpop.f32.mrb[0].mxu0
    %1975 = vdwg.mxu0
    %v1976 = vadd.f32 %v1790, %v1968
    %v1977 = vadd.f32 %v1791, %v1973
    %1978 = vst [vmem:[#allocation9 + $0x10] sm:$0xff] %v1976
    %1979 = vst [vmem:[#allocation9 + $0x18] sm:$0xff] %v1977
    // Predicated region
    $region38: #{tpu_custom_call.1} parent=1 // pred_check
      _
    $region39: #{tpu_custom_call.1} parent=1 // pred_check_branch
      %1981 = sbr.rel (0) target = $region41
    $region40: #{tpu_custom_call.1} parent=1 // pred_region
      %s1983 = ssub.s32 512, 512
      %1984 = vsyncadd [#allocation5], %s1983
      %s1985 = sshll.u32 [#allocation9], 4
      %s1986 = int_to_ptr.vmem [resolvable:$true] %s1985
      %1991 = dma.vmem_to_hbm [thread:$0]  %s1986, 512, %s6, [#allocation5], 128, 128, 8
    $region41: #{tpu_custom_call.1} parent=1 // pred_fallthru
      _
    // Predicated region
    $region42: #{tpu_custom_call.1} parent=1 // pred_check
      _
    $region43: #{tpu_custom_call.1} parent=1 // pred_check_branch
      %1993 = sbr.rel (0) target = $region45
    $region44: #{tpu_custom_call.1} parent=1 // pred_region
      %1994 = dma.done [#allocation5], 512
    $region45: #{tpu_custom_call.1} parent=1 // pred_fallthru
      _
    %1995 = vsyncpa [#allocation4], 1
    %1996 = vsyncpa [#allocation7], 1
    %1997 = vsyncpa [#allocation5], 1

</llo_original>
